<compile_context>
chip_gen: v6e
topology: v6e:2x2x1
jax: 0.10.0
libtpu: 0.0.40
codegen_flags: <defaults>
</compile_context>

<pallas_src>
import jax
import jax.numpy as jnp
from jax.experimental import pallas as pl
from jax.experimental.pallas import tpu as pltpu


# MXU operand dtype.  jnp.float32 guarantees bit-level-tight agreement with the
# reference; jnp.bfloat16 gives native MXU throughput on v6e/v7x (re-verify
# tolerance before enabling — see header comment).  All LayerNorm / gate /
# accumulation math stays in f32 regardless (v5e has no bf16 VPU/EUP).
_MXU_DTYPE = jnp.float32

_VMEM_SPEC = pl.BlockSpec(memory_space=pltpu.MemorySpace.VMEM)


# ------------------------------------------------------------------ helpers --
def _layernorm(x, gamma, beta, eps=1e-5):
    """PyTorch-style LayerNorm over the last dim (biased variance)."""
    mu = jnp.mean(x, axis=-1, keepdims=True)
    var = jnp.mean((x - mu) ** 2, axis=-1, keepdims=True)
    return (x - mu) * jax.lax.rsqrt(var + eps) * gamma + beta


# ------------------------------------------------------------------- kernel --
def _edge_block_kernel(node_ref, edge_ref, ij_ref, trip_ref, tjirow_ref,
                       w2_ref, w3n_ref, w3e_ref, par_ref, o_ref):
    f32 = jnp.float32
    node = node_ref[...]                         # [N, dn]
    edge = edge_ref[...]                         # [E, de]
    N, dn = node.shape
    E, de = o_ref.shape
    T = trip_ref.shape[0]
    de2 = 2 * de
    C = 3 * N + 2 * E

    mxu = lambda x: x.astype(_MXU_DTYPE)

    # ----------------------------- parameter slab ---------------------------
    par = par_ref[...]                           # [8, 2de]
    b2, b3 = par[0:1, :], par[1:2, :]
    c2_g1, c2_b1 = par[2:3, :], par[3:4, :]
    c3_g1, c3_b1 = par[4:5, :], par[5:6, :]
    c2_g2, c2_b2 = par[6:7, :de], par[6:7, de:]
    c3_g2, c3_b2 = par[7:8, :de], par[7:8, de:]

    # ----------------------------- c2 path ----------------------------------
    # gather n_i, n_j as one-hot matmuls (exact in f32), elementwise product,
    # one full-width [dn, 2de] GEMM, LN -> sigmoid/tanh gate -> LN.
    ij = ij_ref[...]                                               # [E, 2]
    node_cols_e = jax.lax.broadcasted_iota(jnp.int32, (E, N), 1)
    oh_i = (ij[:, 0:1] == node_cols_e).astype(_MXU_DTYPE)          # [E, N]
    oh_j = (ij[:, 1:2] == node_cols_e).astype(_MXU_DTYPE)
    nmx = mxu(node)
    x2 = (jnp.dot(oh_i, nmx, preferred_element_type=f32) *
          jnp.dot(oh_j, nmx, preferred_element_type=f32))          # [E, dn]
    h2 = jnp.dot(mxu(x2), mxu(w2_ref[...]), preferred_element_type=f32) + b2
    h2 = _layernorm(h2, c2_g1, c2_b1)                              # [E, 2de]
    c2 = _layernorm(jax.nn.sigmoid(h2[:, :de]) * jnp.tanh(h2[:, de:]),
                    c2_g2, c2_b2)                                  # [E, de]

    # ----------------------------- c3 path ----------------------------------
    # project-then-gather (algebraically exact):
    #   concat([n_ti, n_tj, n_tk, e_ji, e_kj]) @ W3
    #     == onehot_all @ vstack([node@W_i, node@W_j, node@W_k,
    #                             edge@W_ji, edge@W_kj])
    # Projections are TWO lane-dense GEMMs on wrapper-hstacked weight slabs;
    # the five gathers are ONE [T, 3N+2E] @ [3N+2E, 2de] matmul (96-deep).
    pn = jnp.dot(nmx, mxu(w3n_ref[...]), preferred_element_type=f32)  # [N, 3*2de]
    pe = jnp.dot(mxu(edge), mxu(w3e_ref[...]),
                 preferred_element_type=f32)                          # [E, 2*2de]
    p_stack = jnp.concatenate(
        [pn[:, :de2], pn[:, de2:2 * de2], pn[:, 2 * de2:],
         pe[:, :de2], pe[:, de2:]], axis=0)                           # [3N+2E, 2de]

    trip = trip_ref[...]                                              # [T, 5]
    col_ids = jax.lax.broadcasted_iota(jnp.int32, (T, C), 1)
    oh_all = ((col_ids == trip[:, 0:1]) | (col_ids == trip[:, 1:2]) |
              (col_ids == trip[:, 2:3]) | (col_ids == trip[:, 3:4]) |
              (col_ids == trip[:, 4:5])).astype(_MXU_DTYPE)           # [T, C]

    h3 = jnp.dot(oh_all, mxu(p_stack), preferred_element_type=f32) + b3
    h3 = _layernorm(h3, c3_g1, c3_b1)                                 # [T, 2de]
    gated = jax.nn.sigmoid(h3[:, :de]) * jnp.tanh(h3[:, de:])         # [T, de]

    # scatter-sum over index_ji as an [E, T] @ [T, de] matmul (no transpose).
    edge_rows = jax.lax.broadcasted_iota(jnp.int32, (E, T), 0)
    scat = (edge_rows == tjirow_ref[...]).astype(_MXU_DTYPE)          # [E, T]
    c3_sum = jnp.dot(scat, mxu(gated), preferred_element_type=f32)    # [E, de]
    c3 = _layernorm(c3_sum, c3_g2, c3_b2)

    # ----------------------------- combine ----------------------------------
    o_ref[...] = jnp.tanh(edge + c2 + c3)


# ------------------------------------------------------------------ wrapper --
@jax.jit
def edge_block_forward(params, node_embedding, edge_embedding, i, j,
                       index_i, index_j, index_k, index_ji, index_kj):
    f32, i32 = jnp.float32, jnp.int32
    N, dn = node_embedding.shape
    E, de = edge_embedding.shape
    T = index_ji.shape[0]
    dn3 = 3 * dn

    # ---- pack indices ----
    ij_cols = jnp.stack([i, j], axis=1).astype(i32)                   # [E, 2]
    # pre-shifted column targets for the fused [T, 3N+2E] gather one-hot
    trip_cols = jnp.stack([index_i,
                           index_j + N,
                           index_k + 2 * N,
                           index_ji + 3 * N,
                           index_kj + 3 * N + E], axis=1).astype(i32)  # [T, 5]
    tji_row = index_ji.astype(i32).reshape(1, T)                       # [1, T]

    # ---- pack weights (done once per trace, outside the kernel) ----
    w2 = params["w2"].astype(f32)                                      # [dn, 2de]
    w3 = params["w3"].astype(f32)                                      # [3dn+2de, 2de]
    w3n = jnp.concatenate([w3[0:dn], w3[dn:2 * dn], w3[2 * dn:dn3]],
                          axis=1)                                      # [dn, 3*2de]
    w3e = jnp.concatenate([w3[dn3:dn3 + de], w3[dn3 + de:]], axis=1)   # [de, 2*2de]

    # ---- pack all small bias / LayerNorm parameters into one [8, 2de] slab --
    par = jnp.concatenate([
        params["b2"], params["b3"],
        params["c2_g1"], params["c2_b1"],
        params["c3_g1"], params["c3_b1"],
        jnp.concatenate([params["c2_g2"], params["c2_b2"]], axis=1),
        jnp.concatenate([params["c3_g2"], params["c3_b2"]], axis=1),
    ], axis=0).astype(f32)                                             # [8, 2de]

    inputs = (node_embedding.astype(f32), edge_embedding.astype(f32),
              ij_cols, trip_cols, tji_row, w2, w3n, w3e, par)          # 9 DMAs

    return pl.pallas_call(
        _edge_block_kernel,
        out_shape=jax.ShapeDtypeStruct((E, de), f32),
        in_specs=[_VMEM_SPEC] * len(inputs),
        out_specs=_VMEM_SPEC,
    )(*inputs)


# ---------------------------------------------------------- pure-JAX reference
def edge_block_reference(params, node_embedding, edge_embedding, i, j,
                         index_i, index_j, index_k, index_ji, index_kj):
    de = edge_embedding.shape[1]
    c2 = node_embedding[i] * node_embedding[j]
    c2 = _layernorm(c2 @ params["w2"] + params["b2"],
                    params["c2_g1"], params["c2_b1"])
    c2 = _layernorm(jax.nn.sigmoid(c2[:, :de]) * jnp.tanh(c2[:, de:]),
                    params["c2_g2"], params["c2_b2"])

    c3 = jnp.concatenate([node_embedding[index_i], node_embedding[index_j],
                          node_embedding[index_k], edge_embedding[index_ji],
                          edge_embedding[index_kj]], axis=1)
    c3 = _layernorm(c3 @ params["w3"] + params["b3"],
                    params["c3_g1"], params["c3_b1"])
    gated = jax.nn.sigmoid(c3[:, :de]) * jnp.tanh(c3[:, de:])
    c3_sum = jnp.zeros_like(edge_embedding).at[index_ji].add(gated)
    c3 = _layernorm(c3_sum, params["c3_g2"], params["c3_b2"])
    return jnp.tanh(edge_embedding + c2 + c3)


# --------------------------------------------------------------------- main --
if __name__ == "__main__":
    size_node_embedding = 32
    size_edge_embedding = 32
    N, E, T = 16, 24, 40

    dn, de = size_node_embedding, size_edge_embedding
    c3_in = 3 * dn + 2 * de

    key = jax.random.PRNGKey(0)
    ks = jax.random.split(key, 21)

    # PyTorch Linear(in,out) weight is [out,in]; stored pre-transposed [in,out].
    params = {
        "w2": jax.random.normal(ks[0], (dn, 2 * de), jnp.float32) * 0.1,
        "b2": jax.random.normal(ks[1], (1, 2 * de), jnp.float32) * 0.1,
        "w3": jax.random.normal(ks[2], (c3_in, 2 * de), jnp.float32) * 0.1,
        "b3": jax.random.normal(ks[3], (1, 2 * de), jnp.float32) * 0.1,
        "c2_g1": 1.0 + 0.1 * jax.random.normal(ks[4], (1, 2 * de), jnp.float32),
        "c2_b1": 0.1 * jax.random.normal(ks[5], (1, 2 * de), jnp.float32),
        "c3_g1": 1.0 + 0.1 * jax.random.normal(ks[6], (1, 2 * de), jnp.float32),
        "c3_b1": 0.1 * jax.random.normal(ks[7], (1, 2 * de), jnp.float32),
        "c2_g2": 1.0 + 0.1 * jax.random.normal(ks[8], (1, de), jnp.float32),
        "c2_b2": 0.1 * jax.random.normal(ks[9], (1, de), jnp.float32),
        "c3_g2": 1.0 + 0.1 * jax.random.normal(ks[10], (1, de), jnp.float32),
        "c3_b2": 0.1 * jax.random.normal(ks[11], (1, de), jnp.float32),
    }

    node_embedding = jax.random.normal(ks[12], (N, dn), jnp.float32)
    edge_embedding = jax.random.normal(ks[13], (E, de), jnp.float32)

    i = jax.random.randint(ks[14], (E,), 0, N, jnp.int32)
    j = jax.random.randint(ks[15], (E,), 0, N, jnp.int32)
    index_i = jax.random.randint(ks[16], (T,), 0, N, jnp.int32)
    index_j = jax.random.randint(ks[17], (T,), 0, N, jnp.int32)
    index_k = jax.random.randint(ks[18], (T,), 0, N, jnp.int32)
    index_ji = jax.random.randint(ks[19], (T,), 0, E, jnp.int32)
    index_kj = jax.random.randint(ks[20], (T,), 0, E, jnp.int32)

    out = edge_block_forward(params, node_embedding, edge_embedding, i, j,
                             index_i, index_j, index_k, index_ji, index_kj)
    out = jax.block_until_ready(out)
    assert out.shape == (E, de) and out.dtype == jnp.float32

    ref = edge_block_reference(params, node_embedding, edge_embedding, i, j,
                               index_i, index_j, index_k, index_ji, index_kj)
    assert jnp.allclose(out, ref, rtol=1e-2, atol=1e-3), "mismatch vs reference"

    print("KERNEL_OK")
</pallas_src>

<mosaic_0001>
module attributes {stable_mosaic.version = 11 : i64} {
  func.func @_edge_block_kernel(%arg0: memref<16x32xf32, #tpu.memory_space<vmem>>, %arg1: memref<24x32xf32, #tpu.memory_space<vmem>>, %arg2: memref<24x2xi32, #tpu.memory_space<vmem>>, %arg3: memref<40x5xi32, #tpu.memory_space<vmem>>, %arg4: memref<1x40xi32, #tpu.memory_space<vmem>>, %arg5: memref<32x64xf32, #tpu.memory_space<vmem>>, %arg6: memref<32x192xf32, #tpu.memory_space<vmem>>, %arg7: memref<32x128xf32, #tpu.memory_space<vmem>>, %arg8: memref<8x64xf32, #tpu.memory_space<vmem>>, %arg9: memref<24x32xf32, #tpu.memory_space<vmem>>) attributes {dimension_semantics = [], scalar_prefetch = 0 : i64, scratch_operands = 0 : i64, tpu.core_type = #tpu.core_type<tc>} {
    %c0 = arith.constant 0 : index
    %c0_0 = arith.constant 0 : index
    %0 = vector.load %arg0[%c0, %c0_0] : memref<16x32xf32, #tpu.memory_space<vmem>>, vector<16x32xf32>
    %c0_1 = arith.constant 0 : index
    %c0_2 = arith.constant 0 : index
    %1 = vector.load %arg1[%c0_1, %c0_2] : memref<24x32xf32, #tpu.memory_space<vmem>>, vector<24x32xf32>
    %c0_3 = arith.constant 0 : index
    %c0_4 = arith.constant 0 : index
    %2 = vector.load %arg8[%c0_3, %c0_4] : memref<8x64xf32, #tpu.memory_space<vmem>>, vector<8x64xf32>
    %3 = vector.extract_strided_slice %2 {offsets = [0, 0], sizes = [1, 64], strides = [1, 1]} : vector<8x64xf32> to vector<1x64xf32>
    %4 = vector.extract_strided_slice %2 {offsets = [1, 0], sizes = [1, 64], strides = [1, 1]} : vector<8x64xf32> to vector<1x64xf32>
    %5 = vector.extract_strided_slice %2 {offsets = [2, 0], sizes = [1, 64], strides = [1, 1]} : vector<8x64xf32> to vector<1x64xf32>
    %6 = vector.extract_strided_slice %2 {offsets = [3, 0], sizes = [1, 64], strides = [1, 1]} : vector<8x64xf32> to vector<1x64xf32>
    %7 = vector.extract_strided_slice %2 {offsets = [4, 0], sizes = [1, 64], strides = [1, 1]} : vector<8x64xf32> to vector<1x64xf32>
    %8 = vector.extract_strided_slice %2 {offsets = [5, 0], sizes = [1, 64], strides = [1, 1]} : vector<8x64xf32> to vector<1x64xf32>
    %9 = vector.extract_strided_slice %2 {offsets = [6, 0], sizes = [1, 32], strides = [1, 1]} : vector<8x64xf32> to vector<1x32xf32>
    %10 = vector.extract_strided_slice %2 {offsets = [6, 32], sizes = [1, 32], strides = [1, 1]} : vector<8x64xf32> to vector<1x32xf32>
    %11 = vector.extract_strided_slice %2 {offsets = [7, 0], sizes = [1, 32], strides = [1, 1]} : vector<8x64xf32> to vector<1x32xf32>
    %12 = vector.extract_strided_slice %2 {offsets = [7, 32], sizes = [1, 32], strides = [1, 1]} : vector<8x64xf32> to vector<1x32xf32>
    %c0_5 = arith.constant 0 : index
    %c0_6 = arith.constant 0 : index
    %13 = vector.load %arg2[%c0_5, %c0_6] : memref<24x2xi32, #tpu.memory_space<vmem>>, vector<24x2xi32>
    %14 = tpu.iota {dimensions = array<i32: 1>} : vector<24x16xi32>
    %15 = vector.extract_strided_slice %13 {offsets = [0, 0], sizes = [24, 1], strides = [1, 1]} : vector<24x2xi32> to vector<24x1xi32>
    %16 = vector.broadcast %15 : vector<24x1xi32> to vector<24x16xi32>
    %17 = arith.cmpi eq, %16, %14 : vector<24x16xi32>
    %18 = arith.extui %17 : vector<24x16xi1> to vector<24x16xi32>
    %19 = arith.sitofp %18 : vector<24x16xi32> to vector<24x16xf32>
    %20 = vector.extract_strided_slice %13 {offsets = [0, 1], sizes = [24, 1], strides = [1, 1]} : vector<24x2xi32> to vector<24x1xi32>
    %21 = vector.broadcast %20 : vector<24x1xi32> to vector<24x16xi32>
    %22 = arith.cmpi eq, %21, %14 : vector<24x16xi32>
    %23 = arith.extui %22 : vector<24x16xi1> to vector<24x16xi32>
    %24 = arith.sitofp %23 : vector<24x16xi32> to vector<24x16xf32>
    %cst = arith.constant dense<0.000000e+00> : vector<24x32xf32>
    %25 = tpu.matmul %19, %0, %cst {dimension_numbers = #tpu.dot_dimension_numbers<[1], [0], [0], [1], [0, 0, 1, 1], [], []>} : vector<24x16xf32>, vector<16x32xf32>, vector<24x32xf32> -> vector<24x32xf32>
    %cst_7 = arith.constant dense<0.000000e+00> : vector<24x32xf32>
    %26 = tpu.matmul %24, %0, %cst_7 {dimension_numbers = #tpu.dot_dimension_numbers<[1], [0], [0], [1], [0, 0, 1, 1], [], []>} : vector<24x16xf32>, vector<16x32xf32>, vector<24x32xf32> -> vector<24x32xf32>
    %27 = arith.mulf %25, %26 : vector<24x32xf32>
    %c0_8 = arith.constant 0 : index
    %c0_9 = arith.constant 0 : index
    %28 = vector.load %arg5[%c0_8, %c0_9] : memref<32x64xf32, #tpu.memory_space<vmem>>, vector<32x64xf32>
    %cst_10 = arith.constant dense<0.000000e+00> : vector<24x64xf32>
    %29 = tpu.matmul %27, %28, %cst_10 {dimension_numbers = #tpu.dot_dimension_numbers<[1], [0], [0], [1], [0, 0, 1, 1], [], []>} : vector<24x32xf32>, vector<32x64xf32>, vector<24x64xf32> -> vector<24x64xf32>
    %30 = vector.broadcast %3 : vector<1x64xf32> to vector<24x64xf32>
    %31 = arith.addf %29, %30 : vector<24x64xf32>
    %cst_11 = arith.constant dense<0.000000e+00> : vector<24xf32>
    %32 = vector.multi_reduction <add>, %31, %cst_11 [1] : vector<24x64xf32> to vector<24xf32>
    %33 = vector.shape_cast %32 : vector<24xf32> to vector<24x1xf32>
    %cst_12 = arith.constant 6.400000e+01 : f32
    %34 = vector.broadcast %cst_12 : f32 to vector<24x1xf32>
    %35 = arith.divf %33, %34 : vector<24x1xf32>
    %36 = vector.broadcast %35 : vector<24x1xf32> to vector<24x64xf32>
    %37 = arith.subf %31, %36 : vector<24x64xf32>
    %38 = arith.mulf %37, %37 : vector<24x64xf32>
    %cst_13 = arith.constant dense<0.000000e+00> : vector<24xf32>
    %39 = vector.multi_reduction <add>, %38, %cst_13 [1] : vector<24x64xf32> to vector<24xf32>
    %40 = vector.shape_cast %39 : vector<24xf32> to vector<24x1xf32>
    %cst_14 = arith.constant 6.400000e+01 : f32
    %41 = vector.broadcast %cst_14 : f32 to vector<24x1xf32>
    %42 = arith.divf %40, %41 : vector<24x1xf32>
    %43 = vector.broadcast %35 : vector<24x1xf32> to vector<24x64xf32>
    %44 = arith.subf %31, %43 : vector<24x64xf32>
    %cst_15 = arith.constant 9.99999974E-6 : f32
    %45 = vector.broadcast %cst_15 : f32 to vector<24x1xf32>
    %46 = arith.addf %42, %45 : vector<24x1xf32>
    %47 = math.rsqrt %46 : vector<24x1xf32>
    %48 = vector.broadcast %47 : vector<24x1xf32> to vector<24x64xf32>
    %49 = arith.mulf %44, %48 : vector<24x64xf32>
    %50 = vector.broadcast %5 : vector<1x64xf32> to vector<24x64xf32>
    %51 = arith.mulf %49, %50 : vector<24x64xf32>
    %52 = vector.broadcast %6 : vector<1x64xf32> to vector<24x64xf32>
    %53 = arith.addf %51, %52 : vector<24x64xf32>
    %54 = vector.extract_strided_slice %53 {offsets = [0, 0], sizes = [24, 32], strides = [1, 1]} : vector<24x64xf32> to vector<24x32xf32>
    %55 = arith.negf %54 : vector<24x32xf32>
    %56 = math.exp %55 : vector<24x32xf32>
    %cst_16 = arith.constant 1.000000e+00 : f32
    %57 = vector.broadcast %cst_16 : f32 to vector<24x32xf32>
    %58 = arith.addf %57, %56 : vector<24x32xf32>
    %59 = arith.divf %57, %58 : vector<24x32xf32>
    %60 = vector.extract_strided_slice %53 {offsets = [0, 32], sizes = [24, 32], strides = [1, 1]} : vector<24x64xf32> to vector<24x32xf32>
    %61 = math.tanh %60 : vector<24x32xf32>
    %62 = arith.mulf %59, %61 : vector<24x32xf32>
    %cst_17 = arith.constant dense<0.000000e+00> : vector<24xf32>
    %63 = vector.multi_reduction <add>, %62, %cst_17 [1] : vector<24x32xf32> to vector<24xf32>
    %64 = vector.shape_cast %63 : vector<24xf32> to vector<24x1xf32>
    %cst_18 = arith.constant 3.200000e+01 : f32
    %65 = vector.broadcast %cst_18 : f32 to vector<24x1xf32>
    %66 = arith.divf %64, %65 : vector<24x1xf32>
    %67 = vector.broadcast %66 : vector<24x1xf32> to vector<24x32xf32>
    %68 = arith.subf %62, %67 : vector<24x32xf32>
    %69 = arith.mulf %68, %68 : vector<24x32xf32>
    %cst_19 = arith.constant dense<0.000000e+00> : vector<24xf32>
    %70 = vector.multi_reduction <add>, %69, %cst_19 [1] : vector<24x32xf32> to vector<24xf32>
    %71 = vector.shape_cast %70 : vector<24xf32> to vector<24x1xf32>
    %cst_20 = arith.constant 3.200000e+01 : f32
    %72 = vector.broadcast %cst_20 : f32 to vector<24x1xf32>
    %73 = arith.divf %71, %72 : vector<24x1xf32>
    %74 = vector.broadcast %66 : vector<24x1xf32> to vector<24x32xf32>
    %75 = arith.subf %62, %74 : vector<24x32xf32>
    %cst_21 = arith.constant 9.99999974E-6 : f32
    %76 = vector.broadcast %cst_21 : f32 to vector<24x1xf32>
    %77 = arith.addf %73, %76 : vector<24x1xf32>
    %78 = math.rsqrt %77 : vector<24x1xf32>
    %79 = vector.broadcast %78 : vector<24x1xf32> to vector<24x32xf32>
    %80 = arith.mulf %75, %79 : vector<24x32xf32>
    %81 = vector.broadcast %9 : vector<1x32xf32> to vector<24x32xf32>
    %82 = arith.mulf %80, %81 : vector<24x32xf32>
    %83 = vector.broadcast %10 : vector<1x32xf32> to vector<24x32xf32>
    %84 = arith.addf %82, %83 : vector<24x32xf32>
    %c0_22 = arith.constant 0 : index
    %c0_23 = arith.constant 0 : index
    %85 = vector.load %arg6[%c0_22, %c0_23] : memref<32x192xf32, #tpu.memory_space<vmem>>, vector<32x192xf32>
    %cst_24 = arith.constant dense<0.000000e+00> : vector<16x192xf32>
    %86 = tpu.matmul %0, %85, %cst_24 {dimension_numbers = #tpu.dot_dimension_numbers<[1], [0], [0], [1], [0, 0, 1, 1], [], []>} : vector<16x32xf32>, vector<32x192xf32>, vector<16x192xf32> -> vector<16x192xf32>
    %c0_25 = arith.constant 0 : index
    %c0_26 = arith.constant 0 : index
    %87 = vector.load %arg7[%c0_25, %c0_26] : memref<32x128xf32, #tpu.memory_space<vmem>>, vector<32x128xf32>
    %cst_27 = arith.constant dense<0.000000e+00> : vector<24x128xf32>
    %88 = tpu.matmul %1, %87, %cst_27 {dimension_numbers = #tpu.dot_dimension_numbers<[1], [0], [0], [1], [0, 0, 1, 1], [], []>} : vector<24x32xf32>, vector<32x128xf32>, vector<24x128xf32> -> vector<24x128xf32>
    %89 = vector.extract_strided_slice %86 {offsets = [0, 0], sizes = [16, 64], strides = [1, 1]} : vector<16x192xf32> to vector<16x64xf32>
    %90 = vector.extract_strided_slice %86 {offsets = [0, 64], sizes = [16, 64], strides = [1, 1]} : vector<16x192xf32> to vector<16x64xf32>
    %91 = vector.extract_strided_slice %86 {offsets = [0, 128], sizes = [16, 64], strides = [1, 1]} : vector<16x192xf32> to vector<16x64xf32>
    %92 = vector.extract_strided_slice %88 {offsets = [0, 0], sizes = [24, 64], strides = [1, 1]} : vector<24x128xf32> to vector<24x64xf32>
    %93 = vector.extract_strided_slice %88 {offsets = [0, 64], sizes = [24, 64], strides = [1, 1]} : vector<24x128xf32> to vector<24x64xf32>
    %94 = tpu.concatenate %89, %90, %91, %92, %93 in 0 : vector<16x64xf32>, vector<16x64xf32>, vector<16x64xf32>, vector<24x64xf32>, vector<24x64xf32> -> vector<96x64xf32>
    %c0_28 = arith.constant 0 : index
    %c0_29 = arith.constant 0 : index
    %95 = vector.load %arg3[%c0_28, %c0_29] : memref<40x5xi32, #tpu.memory_space<vmem>>, vector<40x5xi32>
    %96 = tpu.iota {dimensions = array<i32: 1>} : vector<40x96xi32>
    %97 = vector.extract_strided_slice %95 {offsets = [0, 0], sizes = [40, 1], strides = [1, 1]} : vector<40x5xi32> to vector<40x1xi32>
    %98 = vector.broadcast %97 : vector<40x1xi32> to vector<40x96xi32>
    %99 = arith.cmpi eq, %96, %98 : vector<40x96xi32>
    %100 = vector.extract_strided_slice %95 {offsets = [0, 1], sizes = [40, 1], strides = [1, 1]} : vector<40x5xi32> to vector<40x1xi32>
    %101 = vector.broadcast %100 : vector<40x1xi32> to vector<40x96xi32>
    %102 = arith.cmpi eq, %96, %101 : vector<40x96xi32>
    %103 = arith.ori %99, %102 : vector<40x96xi1>
    %104 = vector.extract_strided_slice %95 {offsets = [0, 2], sizes = [40, 1], strides = [1, 1]} : vector<40x5xi32> to vector<40x1xi32>
    %105 = vector.broadcast %104 : vector<40x1xi32> to vector<40x96xi32>
    %106 = arith.cmpi eq, %96, %105 : vector<40x96xi32>
    %107 = arith.ori %103, %106 : vector<40x96xi1>
    %108 = vector.extract_strided_slice %95 {offsets = [0, 3], sizes = [40, 1], strides = [1, 1]} : vector<40x5xi32> to vector<40x1xi32>
    %109 = vector.broadcast %108 : vector<40x1xi32> to vector<40x96xi32>
    %110 = arith.cmpi eq, %96, %109 : vector<40x96xi32>
    %111 = arith.ori %107, %110 : vector<40x96xi1>
    %112 = vector.extract_strided_slice %95 {offsets = [0, 4], sizes = [40, 1], strides = [1, 1]} : vector<40x5xi32> to vector<40x1xi32>
    %113 = vector.broadcast %112 : vector<40x1xi32> to vector<40x96xi32>
    %114 = arith.cmpi eq, %96, %113 : vector<40x96xi32>
    %115 = arith.ori %111, %114 : vector<40x96xi1>
    %116 = arith.extui %115 : vector<40x96xi1> to vector<40x96xi32>
    %117 = arith.sitofp %116 : vector<40x96xi32> to vector<40x96xf32>
    %cst_30 = arith.constant dense<0.000000e+00> : vector<40x64xf32>
    %118 = tpu.matmul %117, %94, %cst_30 {dimension_numbers = #tpu.dot_dimension_numbers<[1], [0], [0], [1], [0, 0, 1, 1], [], []>} : vector<40x96xf32>, vector<96x64xf32>, vector<40x64xf32> -> vector<40x64xf32>
    %119 = vector.broadcast %4 : vector<1x64xf32> to vector<40x64xf32>
    %120 = arith.addf %118, %119 : vector<40x64xf32>
    %cst_31 = arith.constant dense<0.000000e+00> : vector<40xf32>
    %121 = vector.multi_reduction <add>, %120, %cst_31 [1] : vector<40x64xf32> to vector<40xf32>
    %122 = vector.shape_cast %121 : vector<40xf32> to vector<40x1xf32>
    %cst_32 = arith.constant 6.400000e+01 : f32
    %123 = vector.broadcast %cst_32 : f32 to vector<40x1xf32>
    %124 = arith.divf %122, %123 : vector<40x1xf32>
    %125 = vector.broadcast %124 : vector<40x1xf32> to vector<40x64xf32>
    %126 = arith.subf %120, %125 : vector<40x64xf32>
    %127 = arith.mulf %126, %126 : vector<40x64xf32>
    %cst_33 = arith.constant dense<0.000000e+00> : vector<40xf32>
    %128 = vector.multi_reduction <add>, %127, %cst_33 [1] : vector<40x64xf32> to vector<40xf32>
    %129 = vector.shape_cast %128 : vector<40xf32> to vector<40x1xf32>
    %cst_34 = arith.constant 6.400000e+01 : f32
    %130 = vector.broadcast %cst_34 : f32 to vector<40x1xf32>
    %131 = arith.divf %129, %130 : vector<40x1xf32>
    %132 = vector.broadcast %124 : vector<40x1xf32> to vector<40x64xf32>
    %133 = arith.subf %120, %132 : vector<40x64xf32>
    %cst_35 = arith.constant 9.99999974E-6 : f32
    %134 = vector.broadcast %cst_35 : f32 to vector<40x1xf32>
    %135 = arith.addf %131, %134 : vector<40x1xf32>
    %136 = math.rsqrt %135 : vector<40x1xf32>
    %137 = vector.broadcast %136 : vector<40x1xf32> to vector<40x64xf32>
    %138 = arith.mulf %133, %137 : vector<40x64xf32>
    %139 = vector.broadcast %7 : vector<1x64xf32> to vector<40x64xf32>
    %140 = arith.mulf %138, %139 : vector<40x64xf32>
    %141 = vector.broadcast %8 : vector<1x64xf32> to vector<40x64xf32>
    %142 = arith.addf %140, %141 : vector<40x64xf32>
    %143 = vector.extract_strided_slice %142 {offsets = [0, 0], sizes = [40, 32], strides = [1, 1]} : vector<40x64xf32> to vector<40x32xf32>
    %144 = arith.negf %143 : vector<40x32xf32>
    %145 = math.exp %144 : vector<40x32xf32>
    %cst_36 = arith.constant 1.000000e+00 : f32
    %146 = vector.broadcast %cst_36 : f32 to vector<40x32xf32>
    %147 = arith.addf %146, %145 : vector<40x32xf32>
    %148 = arith.divf %146, %147 : vector<40x32xf32>
    %149 = vector.extract_strided_slice %142 {offsets = [0, 32], sizes = [40, 32], strides = [1, 1]} : vector<40x64xf32> to vector<40x32xf32>
    %150 = math.tanh %149 : vector<40x32xf32>
    %151 = arith.mulf %148, %150 : vector<40x32xf32>
    %152 = tpu.iota {dimensions = array<i32: 0>} : vector<24x40xi32>
    %c0_37 = arith.constant 0 : index
    %c0_38 = arith.constant 0 : index
    %153 = vector.load %arg4[%c0_37, %c0_38] : memref<1x40xi32, #tpu.memory_space<vmem>>, vector<1x40xi32>
    %154 = vector.broadcast %153 : vector<1x40xi32> to vector<24x40xi32>
    %155 = arith.cmpi eq, %152, %154 : vector<24x40xi32>
    %156 = arith.extui %155 : vector<24x40xi1> to vector<24x40xi32>
    %157 = arith.sitofp %156 : vector<24x40xi32> to vector<24x40xf32>
    %cst_39 = arith.constant dense<0.000000e+00> : vector<24x32xf32>
    %158 = tpu.matmul %157, %151, %cst_39 {dimension_numbers = #tpu.dot_dimension_numbers<[1], [0], [0], [1], [0, 0, 1, 1], [], []>} : vector<24x40xf32>, vector<40x32xf32>, vector<24x32xf32> -> vector<24x32xf32>
    %cst_40 = arith.constant dense<0.000000e+00> : vector<24xf32>
    %159 = vector.multi_reduction <add>, %158, %cst_40 [1] : vector<24x32xf32> to vector<24xf32>
    %160 = vector.shape_cast %159 : vector<24xf32> to vector<24x1xf32>
    %cst_41 = arith.constant 3.200000e+01 : f32
    %161 = vector.broadcast %cst_41 : f32 to vector<24x1xf32>
    %162 = arith.divf %160, %161 : vector<24x1xf32>
    %163 = vector.broadcast %162 : vector<24x1xf32> to vector<24x32xf32>
    %164 = arith.subf %158, %163 : vector<24x32xf32>
    %165 = arith.mulf %164, %164 : vector<24x32xf32>
    %cst_42 = arith.constant dense<0.000000e+00> : vector<24xf32>
    %166 = vector.multi_reduction <add>, %165, %cst_42 [1] : vector<24x32xf32> to vector<24xf32>
    %167 = vector.shape_cast %166 : vector<24xf32> to vector<24x1xf32>
    %cst_43 = arith.constant 3.200000e+01 : f32
    %168 = vector.broadcast %cst_43 : f32 to vector<24x1xf32>
    %169 = arith.divf %167, %168 : vector<24x1xf32>
    %170 = vector.broadcast %162 : vector<24x1xf32> to vector<24x32xf32>
    %171 = arith.subf %158, %170 : vector<24x32xf32>
    %cst_44 = arith.constant 9.99999974E-6 : f32
    %172 = vector.broadcast %cst_44 : f32 to vector<24x1xf32>
    %173 = arith.addf %169, %172 : vector<24x1xf32>
    %174 = math.rsqrt %173 : vector<24x1xf32>
    %175 = vector.broadcast %174 : vector<24x1xf32> to vector<24x32xf32>
    %176 = arith.mulf %171, %175 : vector<24x32xf32>
    %177 = vector.broadcast %11 : vector<1x32xf32> to vector<24x32xf32>
    %178 = arith.mulf %176, %177 : vector<24x32xf32>
    %179 = vector.broadcast %12 : vector<1x32xf32> to vector<24x32xf32>
    %180 = arith.addf %178, %179 : vector<24x32xf32>
    %181 = arith.addf %1, %84 : vector<24x32xf32>
    %182 = arith.addf %181, %180 : vector<24x32xf32>
    %183 = math.tanh %182 : vector<24x32xf32>
    %c0_45 = arith.constant 0 : index
    %c0_46 = arith.constant 0 : index
    %184 = vector.load %arg9[%c0_45, %c0_46] : memref<24x32xf32, #tpu.memory_space<vmem>>, vector<24x32xf32>
    tpu.vector_store %arg9[%c0_45, %c0_46], %183 {strides = array<i32>} : memref<24x32xf32, #tpu.memory_space<vmem>>, vector<24x32xf32>,
    return
  }
}

</mosaic_0001>

<llo_original>
// kernel: edge_block_forward.1
$region0: #{edge_block_forward.1}
  #allocation0 [shape = 'u32[]', space=smem, size = 0x4, offset = 0x4, fixed_abs, tag = 'smem constant byte address 0x4 - core index']
  #allocation1 [shape = 'u32[144,128]{1,0:T(1,128)}', space=vmem, size = 0x12000, scoped, tag = 'internal scratch']
  %s0 = inlined_call_operand.vmem [shape: f32[16,32], index: 0, kind: input, shape index: {}]
  %s1 = inlined_call_operand.vmem [shape: f32[24,32], index: 1, kind: input, shape index: {}]
  %s2 = inlined_call_operand.vmem [shape: s32[24,2], index: 2, kind: input, shape index: {}]
  %s3 = inlined_call_operand.vmem [shape: s32[40,5], index: 3, kind: input, shape index: {}]
  %s4 = inlined_call_operand.vmem [shape: s32[1,40], index: 4, kind: input, shape index: {}]
  %s5 = inlined_call_operand.vmem [shape: f32[32,64], index: 5, kind: input, shape index: {}]
  %s6 = inlined_call_operand.vmem [shape: f32[32,192], index: 6, kind: input, shape index: {}]
  %s7 = inlined_call_operand.vmem [shape: f32[32,128], index: 7, kind: input, shape index: {}]
  %s8 = inlined_call_operand.vmem [shape: f32[8,64], index: 8, kind: input, shape index: {}]
  %s9 = inlined_call_operand.hbm [shape: f32[24,32], index: 9, kind: output, shape index: {}]
  %s10 = sld [smem:[#allocation0]]
  $region46: #{edge_block_forward.1} parent=0
    _
  %s12 = ssub.s32 1, %s10
  %s13 = scalar_select 0, %s12, %s10
  $region1: #{edge_block_forward.1} parent=0
    #allocation2 [shape = 'u8[12288]{0}', space=vmem, size = 0x3000, scoped, tag = 'output window, operand 0, single buffered']
    #allocation3 [shape = 's32[1]{0}', space=sflag, size = 0x4, scoped, tag = 'scoped memory for edge_block_forward.1']
    %14 = vsyncpa [#allocation3], 0
    // Predicated region
    $region2: #{edge_block_forward.1} parent=1 // pred_check
      _
    $region3: #{edge_block_forward.1} parent=1 // pred_check_branch
      %16 = sbr.rel (0) target = $region5
    $region4: #{edge_block_forward.1} parent=1 // pred_region
      _
    $region5: #{edge_block_forward.1} parent=1 // pred_fallthru
      _
    // Predicated region
    $region6: #{edge_block_forward.1} parent=1 // pred_check
      _
    $region7: #{edge_block_forward.1} parent=1 // pred_check_branch
      %18 = sbr.rel (0) target = $region9
    $region8: #{edge_block_forward.1} parent=1 // pred_region
      _
    $region9: #{edge_block_forward.1} parent=1 // pred_fallthru
      _
    // Predicated region
    $region10: #{edge_block_forward.1} parent=1 // pred_check
      _
    $region11: #{edge_block_forward.1} parent=1 // pred_check_branch
      %20 = sbr.rel (0) target = $region13
    $region12: #{edge_block_forward.1} parent=1 // pred_region
      _
    $region13: #{edge_block_forward.1} parent=1 // pred_fallthru
      _
    // Predicated region
    $region14: #{edge_block_forward.1} parent=1 // pred_check
      _
    $region15: #{edge_block_forward.1} parent=1 // pred_check_branch
      %22 = sbr.rel (0) target = $region17
    $region16: #{edge_block_forward.1} parent=1 // pred_region
      _
    $region17: #{edge_block_forward.1} parent=1 // pred_fallthru
      _
    // Predicated region
    $region18: #{edge_block_forward.1} parent=1 // pred_check
      _
    $region19: #{edge_block_forward.1} parent=1 // pred_check_branch
      %24 = sbr.rel (0) target = $region21
    $region20: #{edge_block_forward.1} parent=1 // pred_region
      _
    $region21: #{edge_block_forward.1} parent=1 // pred_fallthru
      _
    // Predicated region
    $region22: #{edge_block_forward.1} parent=1 // pred_check
      _
    $region23: #{edge_block_forward.1} parent=1 // pred_check_branch
      %26 = sbr.rel (0) target = $region25
    $region24: #{edge_block_forward.1} parent=1 // pred_region
      _
    $region25: #{edge_block_forward.1} parent=1 // pred_fallthru
      _
    // Predicated region
    $region26: #{edge_block_forward.1} parent=1 // pred_check
      _
    $region27: #{edge_block_forward.1} parent=1 // pred_check_branch
      %28 = sbr.rel (0) target = $region29
    $region28: #{edge_block_forward.1} parent=1 // pred_region
      _
    $region29: #{edge_block_forward.1} parent=1 // pred_fallthru
      _
    // Predicated region
    $region30: #{edge_block_forward.1} parent=1 // pred_check
      _
    $region31: #{edge_block_forward.1} parent=1 // pred_check_branch
      %30 = sbr.rel (0) target = $region33
    $region32: #{edge_block_forward.1} parent=1 // pred_region
      _
    $region33: #{edge_block_forward.1} parent=1 // pred_fallthru
      _
    // Predicated region
    $region34: #{edge_block_forward.1} parent=1 // pred_check
      _
    $region35: #{edge_block_forward.1} parent=1 // pred_check_branch
      %32 = sbr.rel (0) target = $region37
    $region36: #{edge_block_forward.1} parent=1 // pred_region
      _
    $region37: #{edge_block_forward.1} parent=1 // pred_fallthru
      _
    %v33 = vld [vmem:[%s0] sm:$0xff]
    %v34 = vld [vmem:[%s0 + $0x8] sm:$0xff]
    %v35 = vld [vmem:[%s1] sm:$0xff]
    %v36 = vld [vmem:[%s1 + $0x8] sm:$0xff]
    %v37 = vld [vmem:[%s1 + $0x10] sm:$0xff]
    %v38 = vld [vmem:[%s8] sm:$0xff]
    %v39 = vld [vmem:[%s2] sm:$0xff]
    %v40 = vld [vmem:[%s2 + $0x8] sm:$0xff]
    %v41 = vld [vmem:[%s2 + $0x10] sm:$0xff]
    %v42 = vlaneseq
    %v43 = vand.u32 %v42, 127
    %44 = vset.pattern.permute.xlu0 0
    %45 = vperm.xlu0 %44, %v39
    %v46 = vpop.permute.xlu0 %45
    %47 = vset.pattern.permute.xlu0 0
    %48 = vperm.xlu0 %47, %v40
    %v49 = vpop.permute.xlu0 %48
    %50 = vset.pattern.permute.xlu0 0
    %51 = vperm.xlu0 %50, %v41
    %v52 = vpop.permute.xlu0 %51
    %vm53 = vcmp.eq.s32.totalorder %v46, %v43
    %vm54 = vcmp.eq.s32.totalorder %v49, %v43
    %vm55 = vcmp.eq.s32.totalorder %v52, %v43
    %v56 = vsel %vm53, 1, 0
    %v57 = vsel %vm54, 1, 0
    %v58 = vsel %vm55, 1, 0
    %v59 = vcvt.s32.f32 %v56
    %v60 = vcvt.s32.f32 %v57
    %v61 = vcvt.s32.f32 %v58
    %62 = vset.pattern.permute.xlu0 1
    %63 = vperm.xlu0 %62, %v39
    %v64 = vpop.permute.xlu0 %63
    %65 = vset.pattern.permute.xlu0 1
    %66 = vperm.xlu0 %65, %v40
    %v67 = vpop.permute.xlu0 %66
    %68 = vset.pattern.permute.xlu0 1
    %69 = vperm.xlu0 %68, %v41
    %v70 = vpop.permute.xlu0 %69
    %vm71 = vcmp.eq.s32.totalorder %v64, %v43
    %vm72 = vcmp.eq.s32.totalorder %v67, %v43
    %vm73 = vcmp.eq.s32.totalorder %v70, %v43
    %v74 = vsel %vm71, 1, 0
    %v75 = vsel %vm72, 1, 0
    %v76 = vsel %vm73, 1, 0
    %v77 = vcvt.s32.f32 %v74
    %v78 = vcvt.s32.f32 %v75
    %v79 = vcvt.s32.f32 %v76
    %vm80 = vcmask 130048
    %v82 = vsel %vm80, %v59, 0
    %v85 = vsel %vm80, %v60, 0
    %v88 = vsel %vm80, %v61, 0
    %90 = vmatprep.subr.mxu0 0.0
    %91 = vmatpush1.msra.mxu0 0.0
    %92 = vmatprep.subr.mxu0 0.0
    %93 = vmatpush1.msra.mxu0 0.0
    %94 = vmatprep.subr.mxu0 0.0
    %95 = vmatpush1.msra.mxu0 0.0
    %96 = vmatprep.subr.mxu0 0.0
    %97 = vmatpush1.msra.mxu0 0.0
    %98 = vmatprep.subr.mxu0 0.0
    %99 = vmatpush1.msra.mxu0 0.0
    %100 = vmatprep.subr.mxu0 0.0
    %101 = vmatpush1.msra.mxu0 0.0
    %102 = vmatprep.subr.mxu0 0.0
    %103 = vmatpush1.msra.mxu0 0.0
    %104 = vmatprep.subr.mxu0 0.0
    %105 = vmatpush1.msra.mxu0 0.0
    %106 = vmatprep.subr.mxu0 0.0
    %107 = vmatpush1.msra.mxu0 0.0
    %108 = vmatprep.subr.mxu0 0.0
    %109 = vmatpush1.msra.mxu0 0.0
    %110 = vmatprep.subr.mxu0 0.0
    %111 = vmatpush1.msra.mxu0 0.0
    %112 = vmatprep.subr.mxu0 0.0
    %113 = vmatpush1.msra.mxu0 0.0
    %114 = vmatprep.subr.mxu0 0.0
    %115 = vmatpush1.msra.mxu0 0.0
    %116 = vmatprep.subr.mxu0 0.0
    %117 = vmatpush1.msra.mxu0 0.0
    %118 = vmatprep.subr.mxu0 0.0
    %119 = vmatpush1.msra.mxu0 %v34
    %120 = vmatprep.subr.mxu0 0.0
    %121 = vmatpush1.msra.mxu0 %v33
    %122 = vmatprep.subr.mxu0 0.0
    %123 = vmatpush2.msra.mxu0 0.0
    %124 = vmatprep.subr.mxu0 0.0
    %125 = vmatpush2.msra.mxu0 0.0
    %126 = vmatprep.subr.mxu0 0.0
    %127 = vmatpush2.msra.mxu0 0.0
    %128 = vmatprep.subr.mxu0 0.0
    %129 = vmatpush2.msra.mxu0 0.0
    %130 = vmatprep.subr.mxu0 0.0
    %131 = vmatpush2.msra.mxu0 0.0
    %132 = vmatprep.subr.mxu0 0.0
    %133 = vmatpush2.msra.mxu0 0.0
    %134 = vmatprep.subr.mxu0 0.0
    %135 = vmatpush2.msra.mxu0 0.0
    %136 = vmatprep.subr.mxu0 0.0
    %137 = vmatpush2.msra.mxu0 0.0
    %138 = vmatprep.subr.mxu0 0.0
    %139 = vmatpush2.msra.mxu0 0.0
    %140 = vmatprep.subr.mxu0 0.0
    %141 = vmatpush2.msra.mxu0 0.0
    %142 = vmatprep.subr.mxu0 0.0
    %143 = vmatpush2.msra.mxu0 0.0
    %144 = vmatprep.subr.mxu0 0.0
    %145 = vmatpush2.msra.mxu0 0.0
    %146 = vmatprep.subr.mxu0 0.0
    %147 = vmatpush2.msra.mxu0 0.0
    %148 = vmatprep.subr.mxu0 0.0
    %149 = vmatpush2.msra.mxu0 0.0
    %150 = vmatprep.subr.mxu0 0.0
    %151 = vmatpush2.msra.mxu0 0.0
    %152 = vmatprep.subr.mxu0 0.0
    %153 = vmatpush2.msra.mxu0 0.0
    %154 = vmatprep.mubr.f32.mxu0 0.0
    %155 = vmatmul.mubr.f32.gmra.mxu0 %v82
    %v156 = vpop.f32.mrf.mxu0
    %v157 = vadd.f32 0.0, %v156
    %v158 = vpop.f32.mrf.mxu0
    %159 = vmatprep.mubr.f32.mxu0 0.0
    %160 = vmatmul.mubr.f32.gmra.mxu0 %v85
    %v161 = vpop.f32.mrf.mxu0
    %v162 = vadd.f32 0.0, %v161
    %v163 = vpop.f32.mrf.mxu0
    %164 = vmatprep.mubr.f32.mxu0 0.0
    %165 = vmatmul.mubr.f32.gmra.mxu0 %v88
    %v166 = vpop.f32.mrf.mxu0
    %v167 = vadd.f32 0.0, %v166
    %v168 = vpop.f32.mrf.mxu0
    %169 = vdwg.mxu0
    %v171 = vsel %vm80, %v77, 0
    %v174 = vsel %vm80, %v78, 0
    %v177 = vsel %vm80, %v79, 0
    %179 = vmatprep.subr.mxu0 0.0
    %180 = vmatpush1.msra.mxu0 0.0
    %181 = vmatprep.subr.mxu0 0.0
    %182 = vmatpush1.msra.mxu0 0.0
    %183 = vmatprep.subr.mxu0 0.0
    %184 = vmatpush1.msra.mxu0 0.0
    %185 = vmatprep.subr.mxu0 0.0
    %186 = vmatpush1.msra.mxu0 0.0
    %187 = vmatprep.subr.mxu0 0.0
    %188 = vmatpush1.msra.mxu0 0.0
    %189 = vmatprep.subr.mxu0 0.0
    %190 = vmatpush1.msra.mxu0 0.0
    %191 = vmatprep.subr.mxu0 0.0
    %192 = vmatpush1.msra.mxu0 0.0
    %193 = vmatprep.subr.mxu0 0.0
    %194 = vmatpush1.msra.mxu0 0.0
    %195 = vmatprep.subr.mxu0 0.0
    %196 = vmatpush1.msra.mxu0 0.0
    %197 = vmatprep.subr.mxu0 0.0
    %198 = vmatpush1.msra.mxu0 0.0
    %199 = vmatprep.subr.mxu0 0.0
    %200 = vmatpush1.msra.mxu0 0.0
    %201 = vmatprep.subr.mxu0 0.0
    %202 = vmatpush1.msra.mxu0 0.0
    %203 = vmatprep.subr.mxu0 0.0
    %204 = vmatpush1.msra.mxu0 0.0
    %205 = vmatprep.subr.mxu0 0.0
    %206 = vmatpush1.msra.mxu0 0.0
    %207 = vmatprep.subr.mxu0 0.0
    %208 = vmatpush1.msra.mxu0 %v34
    %209 = vmatprep.subr.mxu0 0.0
    %210 = vmatpush1.msra.mxu0 %v33
    %211 = vmatprep.subr.mxu0 0.0
    %212 = vmatpush2.msra.mxu0 0.0
    %213 = vmatprep.subr.mxu0 0.0
    %214 = vmatpush2.msra.mxu0 0.0
    %215 = vmatprep.subr.mxu0 0.0
    %216 = vmatpush2.msra.mxu0 0.0
    %217 = vmatprep.subr.mxu0 0.0
    %218 = vmatpush2.msra.mxu0 0.0
    %219 = vmatprep.subr.mxu0 0.0
    %220 = vmatpush2.msra.mxu0 0.0
    %221 = vmatprep.subr.mxu0 0.0
    %222 = vmatpush2.msra.mxu0 0.0
    %223 = vmatprep.subr.mxu0 0.0
    %224 = vmatpush2.msra.mxu0 0.0
    %225 = vmatprep.subr.mxu0 0.0
    %226 = vmatpush2.msra.mxu0 0.0
    %227 = vmatprep.subr.mxu0 0.0
    %228 = vmatpush2.msra.mxu0 0.0
    %229 = vmatprep.subr.mxu0 0.0
    %230 = vmatpush2.msra.mxu0 0.0
    %231 = vmatprep.subr.mxu0 0.0
    %232 = vmatpush2.msra.mxu0 0.0
    %233 = vmatprep.subr.mxu0 0.0
    %234 = vmatpush2.msra.mxu0 0.0
    %235 = vmatprep.subr.mxu0 0.0
    %236 = vmatpush2.msra.mxu0 0.0
    %237 = vmatprep.subr.mxu0 0.0
    %238 = vmatpush2.msra.mxu0 0.0
    %239 = vmatprep.subr.mxu0 0.0
    %240 = vmatpush2.msra.mxu0 0.0
    %241 = vmatprep.subr.mxu0 0.0
    %242 = vmatpush2.msra.mxu0 0.0
    %243 = vmatprep.mubr.f32.mxu0 0.0
    %244 = vmatmul.mubr.f32.gmra.mxu0 %v171
    %v245 = vpop.f32.mrf.mxu0
    %v246 = vadd.f32 0.0, %v245
    %v247 = vpop.f32.mrf.mxu0
    %248 = vmatprep.mubr.f32.mxu0 0.0
    %249 = vmatmul.mubr.f32.gmra.mxu0 %v174
    %v250 = vpop.f32.mrf.mxu0
    %v251 = vadd.f32 0.0, %v250
    %v252 = vpop.f32.mrf.mxu0
    %253 = vmatprep.mubr.f32.mxu0 0.0
    %254 = vmatmul.mubr.f32.gmra.mxu0 %v177
    %v255 = vpop.f32.mrf.mxu0
    %v256 = vadd.f32 0.0, %v255
    %v257 = vpop.f32.mrf.mxu0
    %258 = vdwg.mxu0
    %v259 = vmul.f32 %v157, %v246
    %v260 = vmul.f32 %v162, %v251
    %v261 = vmul.f32 %v167, %v256
    %v262 = vld [vmem:[%s5] sm:$0xff]
    %v263 = vld [vmem:[%s5 + $0x8] sm:$0xff]
    %v264 = vld [vmem:[%s5 + $0x10] sm:$0xff]
    %v265 = vld [vmem:[%s5 + $0x18] sm:$0xff]
    %v266 = vlaneseq
    %v267 = vshrl.u32 %v266, 7
    %v268 = vsub.s32 0, %v267
    %v269 = vrot.slane %v38, %v268
    %vm270 = vcmask 261120
    %v272 = vsel %vm270, %v259, 0
    %v275 = vsel %vm270, %v260, 0
    %v278 = vsel %vm270, %v261, 0
    %280 = vmatprep.subr.mxu0 0.0
    %281 = vmatpush1.msra.mxu0 0.0
    %282 = vmatprep.subr.mxu0 0.0
    %283 = vmatpush1.msra.mxu0 0.0
    %284 = vmatprep.subr.mxu0 0.0
    %285 = vmatpush1.msra.mxu0 0.0
    %286 = vmatprep.subr.mxu0 0.0
    %287 = vmatpush1.msra.mxu0 0.0
    %288 = vmatprep.subr.mxu0 0.0
    %289 = vmatpush1.msra.mxu0 0.0
    %290 = vmatprep.subr.mxu0 0.0
    %291 = vmatpush1.msra.mxu0 0.0
    %292 = vmatprep.subr.mxu0 0.0
    %293 = vmatpush1.msra.mxu0 0.0
    %294 = vmatprep.subr.mxu0 0.0
    %295 = vmatpush1.msra.mxu0 0.0
    %296 = vmatprep.subr.mxu0 0.0
    %297 = vmatpush1.msra.mxu0 0.0
    %298 = vmatprep.subr.mxu0 0.0
    %299 = vmatpush1.msra.mxu0 0.0
    %300 = vmatprep.subr.mxu0 0.0
    %301 = vmatpush1.msra.mxu0 0.0
    %302 = vmatprep.subr.mxu0 0.0
    %303 = vmatpush1.msra.mxu0 0.0
    %304 = vmatprep.subr.mxu0 0.0
    %305 = vmatpush1.msra.mxu0 %v265
    %306 = vmatprep.subr.mxu0 0.0
    %307 = vmatpush1.msra.mxu0 %v264
    %308 = vmatprep.subr.mxu0 0.0
    %309 = vmatpush1.msra.mxu0 %v263
    %310 = vmatprep.subr.mxu0 0.0
    %311 = vmatpush1.msra.mxu0 %v262
    %312 = vmatprep.subr.mxu0 0.0
    %313 = vmatpush2.msra.mxu0 0.0
    %314 = vmatprep.subr.mxu0 0.0
    %315 = vmatpush2.msra.mxu0 0.0
    %316 = vmatprep.subr.mxu0 0.0
    %317 = vmatpush2.msra.mxu0 0.0
    %318 = vmatprep.subr.mxu0 0.0
    %319 = vmatpush2.msra.mxu0 0.0
    %320 = vmatprep.subr.mxu0 0.0
    %321 = vmatpush2.msra.mxu0 0.0
    %322 = vmatprep.subr.mxu0 0.0
    %323 = vmatpush2.msra.mxu0 0.0
    %324 = vmatprep.subr.mxu0 0.0
    %325 = vmatpush2.msra.mxu0 0.0
    %326 = vmatprep.subr.mxu0 0.0
    %327 = vmatpush2.msra.mxu0 0.0
    %328 = vmatprep.subr.mxu0 0.0
    %329 = vmatpush2.msra.mxu0 0.0
    %330 = vmatprep.subr.mxu0 0.0
    %331 = vmatpush2.msra.mxu0 0.0
    %332 = vmatprep.subr.mxu0 0.0
    %333 = vmatpush2.msra.mxu0 0.0
    %334 = vmatprep.subr.mxu0 0.0
    %335 = vmatpush2.msra.mxu0 0.0
    %336 = vmatprep.subr.mxu0 0.0
    %337 = vmatpush2.msra.mxu0 0.0
    %338 = vmatprep.subr.mxu0 0.0
    %339 = vmatpush2.msra.mxu0 0.0
    %340 = vmatprep.subr.mxu0 0.0
    %341 = vmatpush2.msra.mxu0 0.0
    %342 = vmatprep.subr.mxu0 0.0
    %343 = vmatpush2.msra.mxu0 0.0
    %344 = vmatprep.mubr.f32.mxu0 0.0
    %345 = vmatmul.mubr.f32.gmra.mxu0 %v272
    %v346 = vpop.f32.mrf.mxu0
    %v347 = vadd.f32 %v269, %v346
    %v348 = vpop.f32.mrf.mxu0
    %349 = vmatprep.mubr.f32.mxu0 0.0
    %350 = vmatmul.mubr.f32.gmra.mxu0 %v275
    %v351 = vpop.f32.mrf.mxu0
    %v352 = vadd.f32 %v269, %v351
    %v353 = vpop.f32.mrf.mxu0
    %354 = vmatprep.mubr.f32.mxu0 0.0
    %355 = vmatmul.mubr.f32.gmra.mxu0 %v278
    %v356 = vpop.f32.mrf.mxu0
    %v357 = vadd.f32 %v269, %v356
    %v358 = vpop.f32.mrf.mxu0
    %359 = vdwg.mxu0
    %vm360 = vcmask 523264
    %v361 = vsel %vm360, %v347, 0.0
    %362 = vadd.xlane.f32.xlu0 %v361
    %v363 = vpop.xlane.xlu0 %362
    %v364 = vsel %vm360, %v352, 0.0
    %365 = vadd.xlane.f32.xlu0 %v364
    %v366 = vpop.xlane.xlu0 %365
    %v367 = vsel %vm360, %v357, 0.0
    %368 = vadd.xlane.f32.xlu0 %v367
    %v369 = vpop.xlane.xlu0 %368
    %v370 = vrcp.pop 64.0
    %v371 = vmul.f32 %v363, %v370
    %v372 = vmul.f32 %v366, %v370
    %v373 = vmul.f32 %v369, %v370
    %v374 = vsub.f32 %v347, %v371
    %v375 = vsub.f32 %v352, %v372
    %v376 = vsub.f32 %v357, %v373
    %v377 = vmul.f32 %v374, %v374
    %v378 = vmul.f32 %v375, %v375
    %v379 = vmul.f32 %v376, %v376
    %v380 = vsel %vm360, %v377, 0.0
    %381 = vadd.xlane.f32.xlu0 %v380
    %v382 = vpop.xlane.xlu0 %381
    %v383 = vsel %vm360, %v378, 0.0
    %384 = vadd.xlane.f32.xlu0 %v383
    %v385 = vpop.xlane.xlu0 %384
    %v386 = vsel %vm360, %v379, 0.0
    %387 = vadd.xlane.f32.xlu0 %v386
    %v388 = vpop.xlane.xlu0 %387
    %v389 = vmul.f32 %v382, %v370
    %v390 = vmul.f32 %v385, %v370
    %v391 = vmul.f32 %v388, %v370
    %v392 = vadd.f32 %v389, 1e-05
    %v393 = vadd.f32 %v390, 1e-05
    %v394 = vadd.f32 %v391, 1e-05
    %v395 = vrsqrt.pop %v392
    %v396 = vrsqrt.pop %v393
    %v397 = vrsqrt.pop %v394
    %v398 = vmul.f32 %v374, %v395
    %v399 = vmul.f32 %v375, %v396
    %v400 = vmul.f32 %v376, %v397
    %v401 = vlaneseq
    %v402 = vshrl.u32 %v401, 7
    %v403 = vsub.s32 2, %v402
    %v404 = vrot.slane %v38, %v403
    %v405 = vmul.f32 %v398, %v404
    %v406 = vmul.f32 %v399, %v404
    %v407 = vmul.f32 %v400, %v404
    %v408 = vlaneseq
    %v409 = vshrl.u32 %v408, 7
    %v410 = vsub.s32 3, %v409
    %v411 = vrot.slane %v38, %v410
    %v412 = vadd.f32 %v405, %v411
    %v413 = vadd.f32 %v406, %v411
    %v414 = vadd.f32 %v407, %v411
    %v415 = vxor.u32 %v412, 2147483648
    %v416 = vxor.u32 %v413, 2147483648
    %v417 = vxor.u32 %v414, 2147483648
    %v418 = vmul.f32 %v415, 1.442695
    %v419 = vpow.pop %v418
    %v420 = vmul.f32 %v416, 1.442695
    %v421 = vpow.pop %v420
    %v422 = vmul.f32 %v417, 1.442695
    %v423 = vpow.pop %v422
    %v424 = vadd.f32 %v419, 1.0
    %v425 = vadd.f32 %v421, 1.0
    %v426 = vadd.f32 %v423, 1.0
    %v427 = vrcp.pop %v424
    %v428 = vmul.f32 1.0, %v427
    %v429 = vrcp.pop %v425
    %v430 = vmul.f32 1.0, %v429
    %v431 = vrcp.pop %v426
    %v432 = vmul.f32 1.0, %v431
    %v433 = vtanh.pop %v412
    %v434 = vtanh.pop %v413
    %v435 = vtanh.pop %v414
    %439 = vrot.lane.b32.xlu0 %v433, 96
    %v440 = vpop.permute.xlu0 %439
    %441 = vrot.lane.b32.xlu0 %v434, 96
    %v442 = vpop.permute.xlu0 %441
    %443 = vrot.lane.b32.xlu0 %v435, 96
    %v444 = vpop.permute.xlu0 %443
    %v448 = vmul.f32 %v428, %v440
    %v449 = vmul.f32 %v430, %v442
    %v450 = vmul.f32 %v432, %v444
    %v451 = vsel %vm270, %v448, 0.0
    %452 = vadd.xlane.f32.xlu0 %v451
    %v453 = vpop.xlane.xlu0 %452
    %v454 = vsel %vm270, %v449, 0.0
    %455 = vadd.xlane.f32.xlu0 %v454
    %v456 = vpop.xlane.xlu0 %455
    %v457 = vsel %vm270, %v450, 0.0
    %458 = vadd.xlane.f32.xlu0 %v457
    %v459 = vpop.xlane.xlu0 %458
    %v460 = vrcp.pop 32.0
    %v461 = vmul.f32 %v453, %v460
    %v462 = vmul.f32 %v456, %v460
    %v463 = vmul.f32 %v459, %v460
    %v464 = vsub.f32 %v448, %v461
    %v465 = vsub.f32 %v449, %v462
    %v466 = vsub.f32 %v450, %v463
    %v467 = vmul.f32 %v464, %v464
    %v468 = vmul.f32 %v465, %v465
    %v469 = vmul.f32 %v466, %v466
    %v470 = vsel %vm270, %v467, 0.0
    %471 = vadd.xlane.f32.xlu0 %v470
    %v472 = vpop.xlane.xlu0 %471
    %v473 = vsel %vm270, %v468, 0.0
    %474 = vadd.xlane.f32.xlu0 %v473
    %v475 = vpop.xlane.xlu0 %474
    %v476 = vsel %vm270, %v469, 0.0
    %477 = vadd.xlane.f32.xlu0 %v476
    %v478 = vpop.xlane.xlu0 %477
    %v479 = vmul.f32 %v472, %v460
    %v480 = vmul.f32 %v475, %v460
    %v481 = vmul.f32 %v478, %v460
    %v482 = vadd.f32 %v479, 1e-05
    %v483 = vadd.f32 %v480, 1e-05
    %v484 = vadd.f32 %v481, 1e-05
    %v485 = vrsqrt.pop %v482
    %v486 = vrsqrt.pop %v483
    %v487 = vrsqrt.pop %v484
    %v488 = vmul.f32 %v464, %v485
    %v489 = vmul.f32 %v465, %v486
    %v490 = vmul.f32 %v466, %v487
    %v491 = vlaneseq
    %v492 = vshrl.u32 %v491, 7
    %v493 = vsub.s32 6, %v492
    %v494 = vrot.slane %v38, %v493
    %v495 = vmul.f32 %v488, %v494
    %v496 = vmul.f32 %v489, %v494
    %v497 = vmul.f32 %v490, %v494
    %499 = vrot.lane.b32.xlu0 %v494, 96
    %v500 = vpop.permute.xlu0 %499
    %v502 = vadd.f32 %v495, %v500
    %v503 = vadd.f32 %v496, %v500
    %v504 = vadd.f32 %v497, %v500
    %v505 = vld [vmem:[%s6] sm:$0xff]
    %v506 = vld [vmem:[%s6 + $0x8] sm:$0xff]
    %v507 = vld [vmem:[%s6 + $0x10] sm:$0xff]
    %v508 = vld [vmem:[%s6 + $0x18] sm:$0xff]
    %v509 = vld [vmem:[%s6 + $0x20] sm:$0xff]
    %v510 = vld [vmem:[%s6 + $0x28] sm:$0xff]
    %v511 = vld [vmem:[%s6 + $0x30] sm:$0xff]
    %v512 = vld [vmem:[%s6 + $0x38] sm:$0xff]
    %v514 = vsel %vm270, %v33, 0
    %v517 = vsel %vm270, %v34, 0
    %519 = vmatprep.subr.mxu0 0.0
    %520 = vmatpush1.msra.mxu0 0.0
    %521 = vmatprep.subr.mxu0 0.0
    %522 = vmatpush1.msra.mxu0 0.0
    %523 = vmatprep.subr.mxu0 0.0
    %524 = vmatpush1.msra.mxu0 0.0
    %525 = vmatprep.subr.mxu0 0.0
    %526 = vmatpush1.msra.mxu0 0.0
    %527 = vmatprep.subr.mxu0 0.0
    %528 = vmatpush1.msra.mxu0 0.0
    %529 = vmatprep.subr.mxu0 0.0
    %530 = vmatpush1.msra.mxu0 0.0
    %531 = vmatprep.subr.mxu0 0.0
    %532 = vmatpush1.msra.mxu0 0.0
    %533 = vmatprep.subr.mxu0 0.0
    %534 = vmatpush1.msra.mxu0 0.0
    %535 = vmatprep.subr.mxu0 0.0
    %536 = vmatpush1.msra.mxu0 0.0
    %537 = vmatprep.subr.mxu0 0.0
    %538 = vmatpush1.msra.mxu0 0.0
    %539 = vmatprep.subr.mxu0 0.0
    %540 = vmatpush1.msra.mxu0 0.0
    %541 = vmatprep.subr.mxu0 0.0
    %542 = vmatpush1.msra.mxu0 0.0
    %543 = vmatprep.subr.mxu0 %v512
    %544 = vmatpush1.msra.mxu0 %v511
    %545 = vmatprep.subr.mxu0 %v510
    %546 = vmatpush1.msra.mxu0 %v509
    %547 = vmatprep.subr.mxu0 %v508
    %548 = vmatpush1.msra.mxu0 %v507
    %549 = vmatprep.subr.mxu0 %v506
    %550 = vmatpush1.msra.mxu0 %v505
    %551 = vmatprep.subr.mxu0 0.0
    %552 = vmatpush2.msra.mxu0 0.0
    %553 = vmatprep.subr.mxu0 0.0
    %554 = vmatpush2.msra.mxu0 0.0
    %555 = vmatprep.subr.mxu0 0.0
    %556 = vmatpush2.msra.mxu0 0.0
    %557 = vmatprep.subr.mxu0 0.0
    %558 = vmatpush2.msra.mxu0 0.0
    %559 = vmatprep.subr.mxu0 0.0
    %560 = vmatpush2.msra.mxu0 0.0
    %561 = vmatprep.subr.mxu0 0.0
    %562 = vmatpush2.msra.mxu0 0.0
    %563 = vmatprep.subr.mxu0 0.0
    %564 = vmatpush2.msra.mxu0 0.0
    %565 = vmatprep.subr.mxu0 0.0
    %566 = vmatpush2.msra.mxu0 0.0
    %567 = vmatprep.subr.mxu0 0.0
    %568 = vmatpush2.msra.mxu0 0.0
    %569 = vmatprep.subr.mxu0 0.0
    %570 = vmatpush2.msra.mxu0 0.0
    %571 = vmatprep.subr.mxu0 0.0
    %572 = vmatpush2.msra.mxu0 0.0
    %573 = vmatprep.subr.mxu0 0.0
    %574 = vmatpush2.msra.mxu0 0.0
    %575 = vmatprep.subr.mxu0 0.0
    %576 = vmatpush2.msra.mxu0 0.0
    %577 = vmatprep.subr.mxu0 0.0
    %578 = vmatpush2.msra.mxu0 0.0
    %579 = vmatprep.subr.mxu0 0.0
    %580 = vmatpush2.msra.mxu0 0.0
    %581 = vmatprep.subr.mxu0 0.0
    %582 = vmatpush2.msra.mxu0 0.0
    %583 = vmatprep.mubr.f32.mxu0 0.0
    %584 = vmatmul.mubr.f32.gmra.mxu0 %v514
    %v585 = vpop.f32.mrf.mxu0
    %v586 = vadd.f32 0.0, %v585
    %v587 = vpop.f32.mrf.mxu0
    %v588 = vadd.f32 0.0, %v587
    %589 = vmatprep.mubr.f32.mxu0 0.0
    %590 = vmatmul.mubr.f32.gmra.mxu0 %v517
    %v591 = vpop.f32.mrf.mxu0
    %v592 = vadd.f32 0.0, %v591
    %v593 = vpop.f32.mrf.mxu0
    %v594 = vadd.f32 0.0, %v593
    %595 = vdwg.mxu0
    %v596 = vld [vmem:[%s7] sm:$0xff]
    %v597 = vld [vmem:[%s7 + $0x8] sm:$0xff]
    %v598 = vld [vmem:[%s7 + $0x10] sm:$0xff]
    %v599 = vld [vmem:[%s7 + $0x18] sm:$0xff]
    %v601 = vsel %vm270, %v35, 0
    %v604 = vsel %vm270, %v36, 0
    %v607 = vsel %vm270, %v37, 0
    %609 = vmatprep.subr.mxu0 0.0
    %610 = vmatpush1.msra.mxu0 0.0
    %611 = vmatprep.subr.mxu0 0.0
    %612 = vmatpush1.msra.mxu0 0.0
    %613 = vmatprep.subr.mxu0 0.0
    %614 = vmatpush1.msra.mxu0 0.0
    %615 = vmatprep.subr.mxu0 0.0
    %616 = vmatpush1.msra.mxu0 0.0
    %617 = vmatprep.subr.mxu0 0.0
    %618 = vmatpush1.msra.mxu0 0.0
    %619 = vmatprep.subr.mxu0 0.0
    %620 = vmatpush1.msra.mxu0 0.0
    %621 = vmatprep.subr.mxu0 0.0
    %622 = vmatpush1.msra.mxu0 0.0
    %623 = vmatprep.subr.mxu0 0.0
    %624 = vmatpush1.msra.mxu0 0.0
    %625 = vmatprep.subr.mxu0 0.0
    %626 = vmatpush1.msra.mxu0 0.0
    %627 = vmatprep.subr.mxu0 0.0
    %628 = vmatpush1.msra.mxu0 0.0
    %629 = vmatprep.subr.mxu0 0.0
    %630 = vmatpush1.msra.mxu0 0.0
    %631 = vmatprep.subr.mxu0 0.0
    %632 = vmatpush1.msra.mxu0 0.0
    %633 = vmatprep.subr.mxu0 0.0
    %634 = vmatpush1.msra.mxu0 %v599
    %635 = vmatprep.subr.mxu0 0.0
    %636 = vmatpush1.msra.mxu0 %v598
    %637 = vmatprep.subr.mxu0 0.0
    %638 = vmatpush1.msra.mxu0 %v597
    %639 = vmatprep.subr.mxu0 0.0
    %640 = vmatpush1.msra.mxu0 %v596
    %641 = vmatprep.subr.mxu0 0.0
    %642 = vmatpush2.msra.mxu0 0.0
    %643 = vmatprep.subr.mxu0 0.0
    %644 = vmatpush2.msra.mxu0 0.0
    %645 = vmatprep.subr.mxu0 0.0
    %646 = vmatpush2.msra.mxu0 0.0
    %647 = vmatprep.subr.mxu0 0.0
    %648 = vmatpush2.msra.mxu0 0.0
    %649 = vmatprep.subr.mxu0 0.0
    %650 = vmatpush2.msra.mxu0 0.0
    %651 = vmatprep.subr.mxu0 0.0
    %652 = vmatpush2.msra.mxu0 0.0
    %653 = vmatprep.subr.mxu0 0.0
    %654 = vmatpush2.msra.mxu0 0.0
    %655 = vmatprep.subr.mxu0 0.0
    %656 = vmatpush2.msra.mxu0 0.0
    %657 = vmatprep.subr.mxu0 0.0
    %658 = vmatpush2.msra.mxu0 0.0
    %659 = vmatprep.subr.mxu0 0.0
    %660 = vmatpush2.msra.mxu0 0.0
    %661 = vmatprep.subr.mxu0 0.0
    %662 = vmatpush2.msra.mxu0 0.0
    %663 = vmatprep.subr.mxu0 0.0
    %664 = vmatpush2.msra.mxu0 0.0
    %665 = vmatprep.subr.mxu0 0.0
    %666 = vmatpush2.msra.mxu0 0.0
    %667 = vmatprep.subr.mxu0 0.0
    %668 = vmatpush2.msra.mxu0 0.0
    %669 = vmatprep.subr.mxu0 0.0
    %670 = vmatpush2.msra.mxu0 0.0
    %671 = vmatprep.subr.mxu0 0.0
    %672 = vmatpush2.msra.mxu0 0.0
    %673 = vmatprep.mubr.f32.mxu0 0.0
    %674 = vmatmul.mubr.f32.gmra.mxu0 %v601
    %v675 = vpop.f32.mrf.mxu0
    %v676 = vadd.f32 0.0, %v675
    %v677 = vpop.f32.mrf.mxu0
    %678 = vmatprep.mubr.f32.mxu0 0.0
    %679 = vmatmul.mubr.f32.gmra.mxu0 %v604
    %v680 = vpop.f32.mrf.mxu0
    %v681 = vadd.f32 0.0, %v680
    %v682 = vpop.f32.mrf.mxu0
    %683 = vmatprep.mubr.f32.mxu0 0.0
    %684 = vmatmul.mubr.f32.gmra.mxu0 %v607
    %v685 = vpop.f32.mrf.mxu0
    %v686 = vadd.f32 0.0, %v685
    %v687 = vpop.f32.mrf.mxu0
    %688 = vdwg.mxu0
    %691 = vrot.lane.b32.xlu0 %v586, 64
    %v692 = vpop.permute.xlu0 %691
    %693 = vrot.lane.b32.xlu0 %v592, 64
    %v694 = vpop.permute.xlu0 %693
    %700 = vrot.lane.b32.xlu0 %v676, 64
    %v701 = vpop.permute.xlu0 %700
    %702 = vrot.lane.b32.xlu0 %v681, 64
    %v703 = vpop.permute.xlu0 %702
    %704 = vrot.lane.b32.xlu0 %v686, 64
    %v705 = vpop.permute.xlu0 %704
    %v709 = vld [vmem:[%s3] sm:$0xff]
    %v710 = vld [vmem:[%s3 + $0x8] sm:$0xff]
    %v711 = vld [vmem:[%s3 + $0x10] sm:$0xff]
    %v712 = vld [vmem:[%s3 + $0x18] sm:$0xff]
    %v713 = vld [vmem:[%s3 + $0x20] sm:$0xff]
    %714 = vset.pattern.permute.xlu0 0
    %715 = vperm.xlu0 %714, %v709
    %v716 = vpop.permute.xlu0 %715
    %717 = vset.pattern.permute.xlu0 0
    %718 = vperm.xlu0 %717, %v710
    %v719 = vpop.permute.xlu0 %718
    %720 = vset.pattern.permute.xlu0 0
    %721 = vperm.xlu0 %720, %v711
    %v722 = vpop.permute.xlu0 %721
    %723 = vset.pattern.permute.xlu0 0
    %724 = vperm.xlu0 %723, %v712
    %v725 = vpop.permute.xlu0 %724
    %726 = vset.pattern.permute.xlu0 0
    %727 = vperm.xlu0 %726, %v713
    %v728 = vpop.permute.xlu0 %727
    %vm729 = vcmp.eq.s32.totalorder %v43, %v716
    %vm730 = vcmp.eq.s32.totalorder %v43, %v719
    %vm731 = vcmp.eq.s32.totalorder %v43, %v722
    %vm732 = vcmp.eq.s32.totalorder %v43, %v725
    %vm733 = vcmp.eq.s32.totalorder %v43, %v728
    %734 = vset.pattern.permute.xlu0 1
    %735 = vperm.xlu0 %734, %v709
    %v736 = vpop.permute.xlu0 %735
    %737 = vset.pattern.permute.xlu0 1
    %738 = vperm.xlu0 %737, %v710
    %v739 = vpop.permute.xlu0 %738
    %740 = vset.pattern.permute.xlu0 1
    %741 = vperm.xlu0 %740, %v711
    %v742 = vpop.permute.xlu0 %741
    %743 = vset.pattern.permute.xlu0 1
    %744 = vperm.xlu0 %743, %v712
    %v745 = vpop.permute.xlu0 %744
    %746 = vset.pattern.permute.xlu0 1
    %747 = vperm.xlu0 %746, %v713
    %v748 = vpop.permute.xlu0 %747
    %vm749 = vcmp.eq.s32.totalorder %v43, %v736
    %vm750 = vcmp.eq.s32.totalorder %v43, %v739
    %vm751 = vcmp.eq.s32.totalorder %v43, %v742
    %vm752 = vcmp.eq.s32.totalorder %v43, %v745
    %vm753 = vcmp.eq.s32.totalorder %v43, %v748
    %vm754 = vmor %vm729, %vm749
    %vm755 = vmor %vm730, %vm750
    %vm756 = vmor %vm731, %vm751
    %vm757 = vmor %vm732, %vm752
    %vm758 = vmor %vm733, %vm753
    %759 = vset.pattern.permute.xlu0 2
    %760 = vperm.xlu0 %759, %v709
    %v761 = vpop.permute.xlu0 %760
    %762 = vset.pattern.permute.xlu0 2
    %763 = vperm.xlu0 %762, %v710
    %v764 = vpop.permute.xlu0 %763
    %765 = vset.pattern.permute.xlu0 2
    %766 = vperm.xlu0 %765, %v711
    %v767 = vpop.permute.xlu0 %766
    %768 = vset.pattern.permute.xlu0 2
    %769 = vperm.xlu0 %768, %v712
    %v770 = vpop.permute.xlu0 %769
    %771 = vset.pattern.permute.xlu0 2
    %772 = vperm.xlu0 %771, %v713
    %v773 = vpop.permute.xlu0 %772
    %vm774 = vcmp.eq.s32.totalorder %v43, %v761
    %vm775 = vcmp.eq.s32.totalorder %v43, %v764
    %vm776 = vcmp.eq.s32.totalorder %v43, %v767
    %vm777 = vcmp.eq.s32.totalorder %v43, %v770
    %vm778 = vcmp.eq.s32.totalorder %v43, %v773
    %vm779 = vmor %vm754, %vm774
    %vm780 = vmor %vm755, %vm775
    %vm781 = vmor %vm756, %vm776
    %vm782 = vmor %vm757, %vm777
    %vm783 = vmor %vm758, %vm778
    %784 = vset.pattern.permute.xlu0 3
    %785 = vperm.xlu0 %784, %v709
    %v786 = vpop.permute.xlu0 %785
    %787 = vset.pattern.permute.xlu0 3
    %788 = vperm.xlu0 %787, %v710
    %v789 = vpop.permute.xlu0 %788
    %790 = vset.pattern.permute.xlu0 3
    %791 = vperm.xlu0 %790, %v711
    %v792 = vpop.permute.xlu0 %791
    %793 = vset.pattern.permute.xlu0 3
    %794 = vperm.xlu0 %793, %v712
    %v795 = vpop.permute.xlu0 %794
    %796 = vset.pattern.permute.xlu0 3
    %797 = vperm.xlu0 %796, %v713
    %v798 = vpop.permute.xlu0 %797
    %vm799 = vcmp.eq.s32.totalorder %v43, %v786
    %vm800 = vcmp.eq.s32.totalorder %v43, %v789
    %vm801 = vcmp.eq.s32.totalorder %v43, %v792
    %vm802 = vcmp.eq.s32.totalorder %v43, %v795
    %vm803 = vcmp.eq.s32.totalorder %v43, %v798
    %vm804 = vmor %vm779, %vm799
    %vm805 = vmor %vm780, %vm800
    %vm806 = vmor %vm781, %vm801
    %vm807 = vmor %vm782, %vm802
    %vm808 = vmor %vm783, %vm803
    %809 = vset.pattern.permute.xlu0 4
    %810 = vperm.xlu0 %809, %v709
    %v811 = vpop.permute.xlu0 %810
    %812 = vset.pattern.permute.xlu0 4
    %813 = vperm.xlu0 %812, %v710
    %v814 = vpop.permute.xlu0 %813
    %815 = vset.pattern.permute.xlu0 4
    %816 = vperm.xlu0 %815, %v711
    %v817 = vpop.permute.xlu0 %816
    %818 = vset.pattern.permute.xlu0 4
    %819 = vperm.xlu0 %818, %v712
    %v820 = vpop.permute.xlu0 %819
    %821 = vset.pattern.permute.xlu0 4
    %822 = vperm.xlu0 %821, %v713
    %v823 = vpop.permute.xlu0 %822
    %vm824 = vcmp.eq.s32.totalorder %v43, %v811
    %vm825 = vcmp.eq.s32.totalorder %v43, %v814
    %vm826 = vcmp.eq.s32.totalorder %v43, %v817
    %vm827 = vcmp.eq.s32.totalorder %v43, %v820
    %vm828 = vcmp.eq.s32.totalorder %v43, %v823
    %vm829 = vmor %vm804, %vm824
    %vm830 = vmor %vm805, %vm825
    %vm831 = vmor %vm806, %vm826
    %vm832 = vmor %vm807, %vm827
    %vm833 = vmor %vm808, %vm828
    %v834 = vsel %vm829, 1, 0
    %v835 = vsel %vm830, 1, 0
    %v836 = vsel %vm831, 1, 0
    %v837 = vsel %vm832, 1, 0
    %v838 = vsel %vm833, 1, 0
    %v839 = vcvt.s32.f32 %v834
    %v840 = vcvt.s32.f32 %v835
    %v841 = vcvt.s32.f32 %v836
    %v842 = vcvt.s32.f32 %v837
    %v843 = vcvt.s32.f32 %v838
    %v844 = vlaneseq
    %v845 = vshrl.u32 %v844, 7
    %v846 = vsub.s32 1, %v845
    %v847 = vrot.slane %v38, %v846
    %vm848 = vcmask 785408
    %v850 = vsel %vm848, %v839, 0
    %v853 = vsel %vm848, %v840, 0
    %v856 = vsel %vm848, %v841, 0
    %v859 = vsel %vm848, %v842, 0
    %v862 = vsel %vm848, %v843, 0
    %864 = vmatprep.subr.mxu0 0.0
    %865 = vmatpush1.msra.mxu0 0.0
    %866 = vmatprep.subr.mxu0 0.0
    %867 = vmatpush1.msra.mxu0 0.0
    %868 = vmatprep.subr.mxu0 0.0
    %869 = vmatpush1.msra.mxu0 0.0
    %870 = vmatprep.subr.mxu0 0.0
    %871 = vmatpush1.msra.mxu0 0.0
    %872 = vmatprep.subr.mxu0 0.0
    %873 = vmatpush1.msra.mxu0 %v705
    %874 = vmatprep.subr.mxu0 0.0
    %875 = vmatpush1.msra.mxu0 %v703
    %876 = vmatprep.subr.mxu0 0.0
    %877 = vmatpush1.msra.mxu0 %v701
    %878 = vmatprep.subr.mxu0 0.0
    %879 = vmatpush1.msra.mxu0 %v686
    %880 = vmatprep.subr.mxu0 0.0
    %881 = vmatpush1.msra.mxu0 %v681
    %882 = vmatprep.subr.mxu0 0.0
    %883 = vmatpush1.msra.mxu0 %v676
    %884 = vmatprep.subr.mxu0 0.0
    %885 = vmatpush1.msra.mxu0 %v594
    %886 = vmatprep.subr.mxu0 0.0
    %887 = vmatpush1.msra.mxu0 %v588
    %888 = vmatprep.subr.mxu0 0.0
    %889 = vmatpush1.msra.mxu0 %v694
    %890 = vmatprep.subr.mxu0 0.0
    %891 = vmatpush1.msra.mxu0 %v692
    %892 = vmatprep.subr.mxu0 0.0
    %893 = vmatpush1.msra.mxu0 %v592
    %894 = vmatprep.subr.mxu0 0.0
    %895 = vmatpush1.msra.mxu0 %v586
    %896 = vmatprep.subr.mxu0 0.0
    %897 = vmatpush2.msra.mxu0 0.0
    %898 = vmatprep.subr.mxu0 0.0
    %899 = vmatpush2.msra.mxu0 0.0
    %900 = vmatprep.subr.mxu0 0.0
    %901 = vmatpush2.msra.mxu0 0.0
    %902 = vmatprep.subr.mxu0 0.0
    %903 = vmatpush2.msra.mxu0 0.0
    %904 = vmatprep.subr.mxu0 0.0
    %905 = vmatpush2.msra.mxu0 0.0
    %906 = vmatprep.subr.mxu0 0.0
    %907 = vmatpush2.msra.mxu0 0.0
    %908 = vmatprep.subr.mxu0 0.0
    %909 = vmatpush2.msra.mxu0 0.0
    %910 = vmatprep.subr.mxu0 0.0
    %911 = vmatpush2.msra.mxu0 0.0
    %912 = vmatprep.subr.mxu0 0.0
    %913 = vmatpush2.msra.mxu0 0.0
    %914 = vmatprep.subr.mxu0 0.0
    %915 = vmatpush2.msra.mxu0 0.0
    %916 = vmatprep.subr.mxu0 0.0
    %917 = vmatpush2.msra.mxu0 0.0
    %918 = vmatprep.subr.mxu0 0.0
    %919 = vmatpush2.msra.mxu0 0.0
    %920 = vmatprep.subr.mxu0 0.0
    %921 = vmatpush2.msra.mxu0 0.0
    %922 = vmatprep.subr.mxu0 0.0
    %923 = vmatpush2.msra.mxu0 0.0
    %924 = vmatprep.subr.mxu0 0.0
    %925 = vmatpush2.msra.mxu0 0.0
    %926 = vmatprep.subr.mxu0 0.0
    %927 = vmatpush2.msra.mxu0 0.0
    %928 = vmatprep.mubr.f32.mxu0 0.0
    %929 = vmatmul.mubr.f32.gmra.mxu0 %v850
    %v930 = vpop.f32.mrf.mxu0
    %v931 = vadd.f32 %v847, %v930
    %v932 = vpop.f32.mrf.mxu0
    %933 = vmatprep.mubr.f32.mxu0 0.0
    %934 = vmatmul.mubr.f32.gmra.mxu0 %v853
    %v935 = vpop.f32.mrf.mxu0
    %v936 = vadd.f32 %v847, %v935
    %v937 = vpop.f32.mrf.mxu0
    %938 = vmatprep.mubr.f32.mxu0 0.0
    %939 = vmatmul.mubr.f32.gmra.mxu0 %v856
    %v940 = vpop.f32.mrf.mxu0
    %v941 = vadd.f32 %v847, %v940
    %v942 = vpop.f32.mrf.mxu0
    %943 = vmatprep.mubr.f32.mxu0 0.0
    %944 = vmatmul.mubr.f32.gmra.mxu0 %v859
    %v945 = vpop.f32.mrf.mxu0
    %v946 = vadd.f32 %v847, %v945
    %v947 = vpop.f32.mrf.mxu0
    %948 = vmatprep.mubr.f32.mxu0 0.0
    %949 = vmatmul.mubr.f32.gmra.mxu0 %v862
    %v950 = vpop.f32.mrf.mxu0
    %v951 = vadd.f32 %v847, %v950
    %v952 = vpop.f32.mrf.mxu0
    %953 = vdwg.mxu0
    %v954 = vsel %vm360, %v931, 0.0
    %955 = vadd.xlane.f32.xlu0 %v954
    %v956 = vpop.xlane.xlu0 %955
    %v957 = vsel %vm360, %v936, 0.0
    %958 = vadd.xlane.f32.xlu0 %v957
    %v959 = vpop.xlane.xlu0 %958
    %v960 = vsel %vm360, %v941, 0.0
    %961 = vadd.xlane.f32.xlu0 %v960
    %v962 = vpop.xlane.xlu0 %961
    %v963 = vsel %vm360, %v946, 0.0
    %964 = vadd.xlane.f32.xlu0 %v963
    %v965 = vpop.xlane.xlu0 %964
    %v966 = vsel %vm360, %v951, 0.0
    %967 = vadd.xlane.f32.xlu0 %v966
    %v968 = vpop.xlane.xlu0 %967
    %v969 = vmul.f32 %v956, %v370
    %v970 = vmul.f32 %v959, %v370
    %v971 = vmul.f32 %v962, %v370
    %v972 = vmul.f32 %v965, %v370
    %v973 = vmul.f32 %v968, %v370
    %v974 = vsub.f32 %v931, %v969
    %v975 = vsub.f32 %v936, %v970
    %v976 = vsub.f32 %v941, %v971
    %v977 = vsub.f32 %v946, %v972
    %v978 = vsub.f32 %v951, %v973
    %v979 = vmul.f32 %v974, %v974
    %v980 = vmul.f32 %v975, %v975
    %v981 = vmul.f32 %v976, %v976
    %v982 = vmul.f32 %v977, %v977
    %v983 = vmul.f32 %v978, %v978
    %v984 = vsel %vm360, %v979, 0.0
    %985 = vadd.xlane.f32.xlu0 %v984
    %v986 = vpop.xlane.xlu0 %985
    %v987 = vsel %vm360, %v980, 0.0
    %988 = vadd.xlane.f32.xlu0 %v987
    %v989 = vpop.xlane.xlu0 %988
    %v990 = vsel %vm360, %v981, 0.0
    %991 = vadd.xlane.f32.xlu0 %v990
    %v992 = vpop.xlane.xlu0 %991
    %v993 = vsel %vm360, %v982, 0.0
    %994 = vadd.xlane.f32.xlu0 %v993
    %v995 = vpop.xlane.xlu0 %994
    %v996 = vsel %vm360, %v983, 0.0
    %997 = vadd.xlane.f32.xlu0 %v996
    %v998 = vpop.xlane.xlu0 %997
    %v999 = vmul.f32 %v986, %v370
    %v1000 = vmul.f32 %v989, %v370
    %v1001 = vmul.f32 %v992, %v370
    %v1002 = vmul.f32 %v995, %v370
    %v1003 = vmul.f32 %v998, %v370
    %v1004 = vadd.f32 %v999, 1e-05
    %v1005 = vadd.f32 %v1000, 1e-05
    %v1006 = vadd.f32 %v1001, 1e-05
    %v1007 = vadd.f32 %v1002, 1e-05
    %v1008 = vadd.f32 %v1003, 1e-05
    %v1009 = vrsqrt.pop %v1004
    %v1010 = vrsqrt.pop %v1005
    %v1011 = vrsqrt.pop %v1006
    %v1012 = vrsqrt.pop %v1007
    %v1013 = vrsqrt.pop %v1008
    %v1014 = vmul.f32 %v974, %v1009
    %v1015 = vmul.f32 %v975, %v1010
    %v1016 = vmul.f32 %v976, %v1011
    %v1017 = vmul.f32 %v977, %v1012
    %v1018 = vmul.f32 %v978, %v1013
    %v1019 = vlaneseq
    %v1020 = vshrl.u32 %v1019, 7
    %v1021 = vsub.s32 4, %v1020
    %v1022 = vrot.slane %v38, %v1021
    %v1023 = vmul.f32 %v1014, %v1022
    %v1024 = vmul.f32 %v1015, %v1022
    %v1025 = vmul.f32 %v1016, %v1022
    %v1026 = vmul.f32 %v1017, %v1022
    %v1027 = vmul.f32 %v1018, %v1022
    %v1028 = vlaneseq
    %v1029 = vshrl.u32 %v1028, 7
    %v1030 = vsub.s32 5, %v1029
    %v1031 = vrot.slane %v38, %v1030
    %v1032 = vadd.f32 %v1023, %v1031
    %v1033 = vadd.f32 %v1024, %v1031
    %v1034 = vadd.f32 %v1025, %v1031
    %v1035 = vadd.f32 %v1026, %v1031
    %v1036 = vadd.f32 %v1027, %v1031
    %v1037 = vxor.u32 %v1032, 2147483648
    %v1038 = vxor.u32 %v1033, 2147483648
    %v1039 = vxor.u32 %v1034, 2147483648
    %v1040 = vxor.u32 %v1035, 2147483648
    %v1041 = vxor.u32 %v1036, 2147483648
    %v1042 = vmul.f32 %v1037, 1.442695
    %v1043 = vpow.pop %v1042
    %v1044 = vmul.f32 %v1038, 1.442695
    %v1045 = vpow.pop %v1044
    %v1046 = vmul.f32 %v1039, 1.442695
    %v1047 = vpow.pop %v1046
    %v1048 = vmul.f32 %v1040, 1.442695
    %v1049 = vpow.pop %v1048
    %v1050 = vmul.f32 %v1041, 1.442695
    %v1051 = vpow.pop %v1050
    %v1052 = vadd.f32 %v1043, 1.0
    %v1053 = vadd.f32 %v1045, 1.0
    %v1054 = vadd.f32 %v1047, 1.0
    %v1055 = vadd.f32 %v1049, 1.0
    %v1056 = vadd.f32 %v1051, 1.0
    %v1057 = vrcp.pop %v1052
    %v1058 = vmul.f32 1.0, %v1057
    %v1059 = vrcp.pop %v1053
    %v1060 = vmul.f32 1.0, %v1059
    %v1061 = vrcp.pop %v1054
    %v1062 = vmul.f32 1.0, %v1061
    %v1063 = vrcp.pop %v1055
    %v1064 = vmul.f32 1.0, %v1063
    %v1065 = vrcp.pop %v1056
    %v1066 = vmul.f32 1.0, %v1065
    %v1067 = vtanh.pop %v1032
    %v1068 = vtanh.pop %v1033
    %v1069 = vtanh.pop %v1034
    %v1070 = vtanh.pop %v1035
    %v1071 = vtanh.pop %v1036
    %1077 = vrot.lane.b32.xlu0 %v1067, 96
    %v1078 = vpop.permute.xlu0 %1077
    %1079 = vrot.lane.b32.xlu0 %v1068, 96
    %v1080 = vpop.permute.xlu0 %1079
    %1081 = vrot.lane.b32.xlu0 %v1069, 96
    %v1082 = vpop.permute.xlu0 %1081
    %1083 = vrot.lane.b32.xlu0 %v1070, 96
    %v1084 = vpop.permute.xlu0 %1083
    %1085 = vrot.lane.b32.xlu0 %v1071, 96
    %v1086 = vpop.permute.xlu0 %1085
    %v1092 = vmul.f32 %v1058, %v1078
    %v1093 = vmul.f32 %v1060, %v1080
    %v1094 = vmul.f32 %v1062, %v1082
    %v1095 = vmul.f32 %v1064, %v1084
    %v1096 = vmul.f32 %v1066, %v1086
    %v1097 = vlaneseq
    %v1098 = vshrl.u32 %v1097, 7
    %v1099 = vadd.s32 %v1098, 8
    %v1100 = vadd.s32 %v1098, 16
    %v1101 = vld [vmem:[%s4] sm:$0x1]
    %v1102 = vlaneseq
    %v1103 = vshrl.u32 %v1102, 7
    %v1104 = vsub.s32 0, %v1103
    %v1105 = vrot.slane %v1101, %v1104
    %vm1106 = vcmp.eq.s32.totalorder %v1098, %v1105
    %vm1107 = vcmp.eq.s32.totalorder %v1099, %v1105
    %vm1108 = vcmp.eq.s32.totalorder %v1100, %v1105
    %v1109 = vsel %vm1106, 1, 0
    %v1110 = vsel %vm1107, 1, 0
    %v1111 = vsel %vm1108, 1, 0
    %v1112 = vcvt.s32.f32 %v1109
    %v1113 = vcvt.s32.f32 %v1110
    %v1114 = vcvt.s32.f32 %v1111
    %vm1115 = vcmask 326656
    %v1117 = vsel %vm1115, %v1112, 0
    %v1120 = vsel %vm1115, %v1113, 0
    %v1123 = vsel %vm1115, %v1114, 0
    %1125 = vmatprep.subr.mxu0 0.0
    %1126 = vmatpush1.msra.mxu0 0.0
    %1127 = vmatprep.subr.mxu0 0.0
    %1128 = vmatpush1.msra.mxu0 0.0
    %1129 = vmatprep.subr.mxu0 0.0
    %1130 = vmatpush1.msra.mxu0 0.0
    %1131 = vmatprep.subr.mxu0 0.0
    %1132 = vmatpush1.msra.mxu0 0.0
    %1133 = vmatprep.subr.mxu0 0.0
    %1134 = vmatpush1.msra.mxu0 0.0
    %1135 = vmatprep.subr.mxu0 0.0
    %1136 = vmatpush1.msra.mxu0 0.0
    %1137 = vmatprep.subr.mxu0 0.0
    %1138 = vmatpush1.msra.mxu0 0.0
    %1139 = vmatprep.subr.mxu0 0.0
    %1140 = vmatpush1.msra.mxu0 0.0
    %1141 = vmatprep.subr.mxu0 0.0
    %1142 = vmatpush1.msra.mxu0 0.0
    %1143 = vmatprep.subr.mxu0 0.0
    %1144 = vmatpush1.msra.mxu0 0.0
    %1145 = vmatprep.subr.mxu0 0.0
    %1146 = vmatpush1.msra.mxu0 0.0
    %1147 = vmatprep.subr.mxu0 0.0
    %1148 = vmatpush1.msra.mxu0 %v1096
    %1149 = vmatprep.subr.mxu0 0.0
    %1150 = vmatpush1.msra.mxu0 %v1095
    %1151 = vmatprep.subr.mxu0 0.0
    %1152 = vmatpush1.msra.mxu0 %v1094
    %1153 = vmatprep.subr.mxu0 0.0
    %1154 = vmatpush1.msra.mxu0 %v1093
    %1155 = vmatprep.subr.mxu0 0.0
    %1156 = vmatpush1.msra.mxu0 %v1092
    %1157 = vmatprep.subr.mxu0 0.0
    %1158 = vmatpush2.msra.mxu0 0.0
    %1159 = vmatprep.subr.mxu0 0.0
    %1160 = vmatpush2.msra.mxu0 0.0
    %1161 = vmatprep.subr.mxu0 0.0
    %1162 = vmatpush2.msra.mxu0 0.0
    %1163 = vmatprep.subr.mxu0 0.0
    %1164 = vmatpush2.msra.mxu0 0.0
    %1165 = vmatprep.subr.mxu0 0.0
    %1166 = vmatpush2.msra.mxu0 0.0
    %1167 = vmatprep.subr.mxu0 0.0
    %1168 = vmatpush2.msra.mxu0 0.0
    %1169 = vmatprep.subr.mxu0 0.0
    %1170 = vmatpush2.msra.mxu0 0.0
    %1171 = vmatprep.subr.mxu0 0.0
    %1172 = vmatpush2.msra.mxu0 0.0
    %1173 = vmatprep.subr.mxu0 0.0
    %1174 = vmatpush2.msra.mxu0 0.0
    %1175 = vmatprep.subr.mxu0 0.0
    %1176 = vmatpush2.msra.mxu0 0.0
    %1177 = vmatprep.subr.mxu0 0.0
    %1178 = vmatpush2.msra.mxu0 0.0
    %1179 = vmatprep.subr.mxu0 0.0
    %1180 = vmatpush2.msra.mxu0 0.0
    %1181 = vmatprep.subr.mxu0 0.0
    %1182 = vmatpush2.msra.mxu0 0.0
    %1183 = vmatprep.subr.mxu0 0.0
    %1184 = vmatpush2.msra.mxu0 0.0
    %1185 = vmatprep.subr.mxu0 0.0
    %1186 = vmatpush2.msra.mxu0 0.0
    %1187 = vmatprep.subr.mxu0 0.0
    %1188 = vmatpush2.msra.mxu0 0.0
    %1189 = vmatprep.mubr.f32.mxu0 0.0
    %1190 = vmatmul.mubr.f32.gmra.mxu0 %v1117
    %v1191 = vpop.f32.mrf.mxu0
    %v1192 = vadd.f32 0.0, %v1191
    %v1193 = vpop.f32.mrf.mxu0
    %1194 = vmatprep.mubr.f32.mxu0 0.0
    %1195 = vmatmul.mubr.f32.gmra.mxu0 %v1120
    %v1196 = vpop.f32.mrf.mxu0
    %v1197 = vadd.f32 0.0, %v1196
    %v1198 = vpop.f32.mrf.mxu0
    %1199 = vmatprep.mubr.f32.mxu0 0.0
    %1200 = vmatmul.mubr.f32.gmra.mxu0 %v1123
    %v1201 = vpop.f32.mrf.mxu0
    %v1202 = vadd.f32 0.0, %v1201
    %v1203 = vpop.f32.mrf.mxu0
    %1204 = vdwg.mxu0
    %v1205 = vsel %vm270, %v1192, 0.0
    %1206 = vadd.xlane.f32.xlu0 %v1205
    %v1207 = vpop.xlane.xlu0 %1206
    %v1208 = vsel %vm270, %v1197, 0.0
    %1209 = vadd.xlane.f32.xlu0 %v1208
    %v1210 = vpop.xlane.xlu0 %1209
    %v1211 = vsel %vm270, %v1202, 0.0
    %1212 = vadd.xlane.f32.xlu0 %v1211
    %v1213 = vpop.xlane.xlu0 %1212
    %v1214 = vmul.f32 %v1207, %v460
    %v1215 = vmul.f32 %v1210, %v460
    %v1216 = vmul.f32 %v1213, %v460
    %v1217 = vsub.f32 %v1192, %v1214
    %v1218 = vsub.f32 %v1197, %v1215
    %v1219 = vsub.f32 %v1202, %v1216
    %v1220 = vmul.f32 %v1217, %v1217
    %v1221 = vmul.f32 %v1218, %v1218
    %v1222 = vmul.f32 %v1219, %v1219
    %v1223 = vsel %vm270, %v1220, 0.0
    %1224 = vadd.xlane.f32.xlu0 %v1223
    %v1225 = vpop.xlane.xlu0 %1224
    %v1226 = vsel %vm270, %v1221, 0.0
    %1227 = vadd.xlane.f32.xlu0 %v1226
    %v1228 = vpop.xlane.xlu0 %1227
    %v1229 = vsel %vm270, %v1222, 0.0
    %1230 = vadd.xlane.f32.xlu0 %v1229
    %v1231 = vpop.xlane.xlu0 %1230
    %v1232 = vmul.f32 %v1225, %v460
    %v1233 = vmul.f32 %v1228, %v460
    %v1234 = vmul.f32 %v1231, %v460
    %v1235 = vadd.f32 %v1232, 1e-05
    %v1236 = vadd.f32 %v1233, 1e-05
    %v1237 = vadd.f32 %v1234, 1e-05
    %v1238 = vrsqrt.pop %v1235
    %v1239 = vrsqrt.pop %v1236
    %v1240 = vrsqrt.pop %v1237
    %v1241 = vmul.f32 %v1217, %v1238
    %v1242 = vmul.f32 %v1218, %v1239
    %v1243 = vmul.f32 %v1219, %v1240
    %v1244 = vlaneseq
    %v1245 = vshrl.u32 %v1244, 7
    %v1246 = vsub.s32 7, %v1245
    %v1247 = vrot.slane %v38, %v1246
    %v1248 = vmul.f32 %v1241, %v1247
    %v1249 = vmul.f32 %v1242, %v1247
    %v1250 = vmul.f32 %v1243, %v1247
    %1252 = vrot.lane.b32.xlu0 %v1247, 96
    %v1253 = vpop.permute.xlu0 %1252
    %v1255 = vadd.f32 %v1248, %v1253
    %v1256 = vadd.f32 %v1249, %v1253
    %v1257 = vadd.f32 %v1250, %v1253
    %v1258 = vadd.f32 %v35, %v502
    %v1259 = vadd.f32 %v36, %v503
    %v1260 = vadd.f32 %v37, %v504
    %v1261 = vadd.f32 %v1258, %v1255
    %v1262 = vadd.f32 %v1259, %v1256
    %v1263 = vadd.f32 %v1260, %v1257
    %v1264 = vtanh.pop %v1261
    %v1265 = vtanh.pop %v1262
    %v1266 = vtanh.pop %v1263
    %1267 = vst.msk [vmem:[#allocation2] sm:$0xff] %vm270, %v1264
    %1268 = vst.msk [vmem:[#allocation2 + $0x8] sm:$0xff] %vm270, %v1265
    %1269 = vst.msk [vmem:[#allocation2 + $0x10] sm:$0xff] %vm270, %v1266
    // Predicated region
    $region38: #{edge_block_forward.1} parent=1 // pred_check
      _
    $region39: #{edge_block_forward.1} parent=1 // pred_check_branch
      %1271 = sbr.rel (0) target = $region41
    $region40: #{edge_block_forward.1} parent=1 // pred_region
      %s1273 = ssub.s32 384, 384
      %1274 = vsyncadd [#allocation3], %s1273
      %s1275 = sshll.u32 [#allocation2], 4
      %s1276 = int_to_ptr.vmem [resolvable:$true] %s1275
      %1281 = dma.vmem_to_hbm [thread:$0]  %s1276, 384, %s9, [#allocation3], 128, 128, 8
    $region41: #{edge_block_forward.1} parent=1 // pred_fallthru
      _
    // Predicated region
    $region42: #{edge_block_forward.1} parent=1 // pred_check
      _
    $region43: #{edge_block_forward.1} parent=1 // pred_check_branch
      %1283 = sbr.rel (0) target = $region45
    $region44: #{edge_block_forward.1} parent=1 // pred_region
      %1284 = dma.done [#allocation3], 384
    $region45: #{edge_block_forward.1} parent=1 // pred_fallthru
      _
    %1285 = vsyncpa [#allocation3], 1

</llo_original>
